<compile_context>
chip_gen: v7x
topology: tpu7x:2x2x1
jax: 0.10.0
libtpu: 0.0.40
codegen_flags: <defaults>
</compile_context>

<pallas_src>
import functools
import math

import jax
import jax.numpy as jnp
from jax import lax
from jax.experimental import pallas as pl
from jax.experimental.pallas import tpu as pltpu

# ---------------- configuration (dataset='MNIST', GaussianFixedSigma) --------
IMG_HW = 28
IMG_C = 1
D_IN = IMG_C * IMG_HW * IMG_HW          # 784 flattened pixels
D_PAD = 896                             # 7 * 128, lane-aligned
H = 32                                  # hidden width
ZD = 8                                  # top latent z dim
YD = 16                                 # intermediate latent y dim
SIGMA = 0.03
LOG_SIGMA = math.log(SIGMA)             # fixed log sigma (GaussianFixedSigma)
BETA_Y = 1.0
BETA_Z = 1.0
LOG2PI = math.log(2.0 * math.pi)
INV_2SIGMA2 = 0.5 * math.exp(-2.0 * LOG_SIGMA)          # 0.5 / sigma^2
NLL_CONST = 0.5 * D_IN * (2.0 * LOG_SIGMA + LOG2PI)     # constant nll term

TILE_B_MAX = 256                        # batch tile (multiple of 8; v5e-safe)
OUT_LANES = 128                         # packed per-example output slab width

# lane layout of the packed (B, 128) output slab
_O_QZMU = 0
_O_QZSTD = _O_QZMU + ZD
_O_Z = _O_QZSTD + ZD
_O_QYMU = _O_Z + ZD
_O_QYSTD = _O_QYMU + YD
_O_PYMU = _O_QYSTD + YD
_O_PYSTD = _O_PYMU + YD
_O_LL = _O_PYSTD + YD
_O_KLZ = _O_LL + 1
_O_KLY = _O_KLZ + 1
_O_ELBO = _O_KLY + 1
_O_PAD = OUT_LANES - (_O_ELBO + 1)

# TODO(synk): GumbelSoftmax q(z) (scatter_-based straight-through) and the MoL
# likelihood path depend on external `utils` and are not implemented here.


def _softplus(x):
    return jnp.logaddexp(x, 0.0)


def lvae_kernel(x_ref, eps_z_ref, eps_y_ref,
                w1_ref, b1_ref, wz_ref, bz_ref,
                wp1_ref, bp1_ref, wp_ref, bp_ref,
                wd_ref, bd_ref, wd1_ref, bd1_ref,
                wout_ref, bout_ref,
                out_ref, *, wu_temp):
    f32 = jnp.float32
    bf16 = jnp.bfloat16

    x = x_ref[...]                                   # (T, D_PAD) f32
    x_b = x.astype(bf16)

    # ---- q_z(x): encoder -> z, qz_mu, qz_std, dy ---------------------------
    h1 = jnp.tanh(jnp.dot(x_b, w1_ref[...], preferred_element_type=f32)
                  + b1_ref[...])
    h1_b = h1.astype(bf16)                           # dy features reused below
    qz_heads = jnp.dot(h1_b, wz_ref[...], preferred_element_type=f32) + bz_ref[...]
    qz_mu = qz_heads[:, :ZD]
    qz_std = _softplus(qz_heads[:, ZD:]) + 1e-4
    z = qz_mu + eps_z_ref[...] * qz_std              # reparameterize_Normal

    # ---- p_y(z): conditional prior over y ----------------------------------
    hp = jnp.tanh(jnp.dot(z.astype(bf16), wp1_ref[...], preferred_element_type=f32)
                  + bp1_ref[...])
    py_heads = jnp.dot(hp.astype(bf16), wp_ref[...], preferred_element_type=f32) + bp_ref[...]
    py_mu = py_heads[:, :YD]
    py_std = _softplus(py_heads[:, YD:]) + 1e-4

    # ---- q_y(dy, py_mu, py_std): precision-weighted merge ------------------
    dy_heads = jnp.dot(h1_b, wd_ref[...], preferred_element_type=f32) + bd_ref[...]
    dy_mu = dy_heads[:, :YD]
    dy_std = _softplus(dy_heads[:, YD:]) + 1e-4
    py_prec = pl.reciprocal(py_std * py_std, approx=True)   # EUP
    dy_prec = pl.reciprocal(dy_std * dy_std, approx=True)   # EUP
    q_prec = py_prec + dy_prec
    qy_std = lax.rsqrt(q_prec)                               # EUP
    qy_mu = (py_mu * py_prec + dy_mu * dy_prec) * pl.reciprocal(q_prec, approx=True)
    y = qy_mu + eps_y_ref[...] * qy_std              # reparameterize_Normal

    # ---- p_x(y): decoder ----------------------------------------------------
    hd = jnp.tanh(jnp.dot(y.astype(bf16), wd1_ref[...], preferred_element_type=f32)
                  + bd1_ref[...])
    fy = jax.nn.sigmoid(jnp.dot(hd.astype(bf16), wout_ref[...],
                                preferred_element_type=f32) + bout_ref[...])

    # ---- loglikelihood_x_y, GaussianFixedSigma (constants folded out) ------
    lane = lax.broadcasted_iota(jnp.int32, (1, D_PAD), 1)
    diff = jnp.where(lane < D_IN, x - fy, 0.0)       # mask padded lanes
    ll = -(INV_2SIGMA2 * jnp.sum(diff * diff, axis=-1, keepdims=True)
           + NLL_CONST)                                                # (T, 1)

    # ---- KL(q_z || N(0, I)), Independent over last dim ----------------------
    kl_z = jnp.sum(-jnp.log(qz_std)
                   + 0.5 * (qz_std * qz_std + qz_mu * qz_mu) - 0.5,
                   axis=-1, keepdims=True)                             # (T, 1)

    # ---- KL(q_y || p_y), Independent over last dim ---------------------------
    dmu = qy_mu - py_mu
    kl_y = jnp.sum(jnp.log(py_std) - jnp.log(qy_std)
                   + 0.5 * (qy_std * qy_std + dmu * dmu) * py_prec - 0.5,
                   axis=-1, keepdims=True)                             # (T, 1)

    elbo = ll - wu_temp * BETA_Y * kl_y - wu_temp * BETA_Z * kl_z

    # ---- single lane-dense output slab --------------------------------------
    tile_b = x.shape[0]
    out_ref[...] = jnp.concatenate(
        [qz_mu, qz_std, z, qy_mu, qy_std, py_mu, py_std,
         ll, kl_z, kl_y, elbo,
         jnp.zeros((tile_b, _O_PAD), f32)],
        axis=-1)


def lvae_forward(x_flat, eps_z, eps_y, params, wu_temp=1.0):
    (w1, b1, wzmu, bzmu, wzls, bzls,
     wp1, bp1, wpmu, bpmu, wpls, bpls,
     wdmu, bdmu, wdls, bdls,
     wd1, bd1, wout, bout) = params
    f32, bf16 = jnp.float32, jnp.bfloat16
    B = x_flat.shape[0]

    # pick batch tile (multiple of 8, capped so it fits v5e scoped VMEM)
    tile_b = min(TILE_B_MAX, max(8, -(-B // 8) * 8))
    b_pad = -(-B // tile_b) * tile_b
    grid = (b_pad // tile_b,)

    def pad_rows(a):
        return jnp.pad(a, ((0, b_pad - B), (0, 0)))

    # lane-pad pixels 784 -> 896, row-pad the batch
    x_p = pad_rows(jnp.pad(x_flat.astype(f32), ((0, 0), (0, D_PAD - D_IN))))
    eps_z_p = pad_rows(eps_z.astype(f32))
    eps_y_p = pad_rows(eps_y.astype(f32))

    # pack paired heads, pad the 784-wide layers, stream weights as bf16
    w1_k = jnp.pad(w1, ((0, D_PAD - D_IN), (0, 0))).astype(bf16)
    b1_k = b1.astype(f32)
    wz_k = jnp.concatenate([wzmu, wzls], axis=1).astype(bf16)
    bz_k = jnp.concatenate([bzmu, bzls], axis=1).astype(f32)
    wp1_k = wp1.astype(bf16)
    bp1_k = bp1.astype(f32)
    wp_k = jnp.concatenate([wpmu, wpls], axis=1).astype(bf16)
    bp_k = jnp.concatenate([bpmu, bpls], axis=1).astype(f32)
    wd_k = jnp.concatenate([wdmu, wdls], axis=1).astype(bf16)
    bd_k = jnp.concatenate([bdmu, bdls], axis=1).astype(f32)
    wd1_k = wd1.astype(bf16)
    bd1_k = bd1.astype(f32)
    wout_k = jnp.pad(wout, ((0, 0), (0, D_PAD - D_IN))).astype(bf16)
    bout_k = jnp.pad(bout, ((0, 0), (0, D_PAD - D_IN))).astype(f32)

    row_map = lambda i: (i, 0)
    fix_map = lambda i: (0, 0)

    def fixed(shape):
        return pl.BlockSpec(shape, fix_map)

    in_specs = [
        pl.BlockSpec((tile_b, D_PAD), row_map),      # x
        pl.BlockSpec((tile_b, ZD), row_map),         # eps_z
        pl.BlockSpec((tile_b, YD), row_map),         # eps_y
        fixed((D_PAD, H)), fixed((1, H)),            # w1, b1
        fixed((H, 2 * ZD)), fixed((1, 2 * ZD)),      # [wzmu|wzls], [bzmu|bzls]
        fixed((ZD, H)), fixed((1, H)),               # wp1, bp1
        fixed((H, 2 * YD)), fixed((1, 2 * YD)),      # [wpmu|wpls], [bpmu|bpls]
        fixed((H, 2 * YD)), fixed((1, 2 * YD)),      # [wdmu|wdls], [bdmu|bdls]
        fixed((YD, H)), fixed((1, H)),               # wd1, bd1
        fixed((H, D_PAD)), fixed((1, D_PAD)),        # wout, bout
    ]
    out_spec = pl.BlockSpec((tile_b, OUT_LANES), row_map)

    out = pl.pallas_call(
        functools.partial(lvae_kernel, wu_temp=float(wu_temp)),
        out_shape=jax.ShapeDtypeStruct((b_pad, OUT_LANES), f32),
        grid=grid,
        in_specs=in_specs,
        out_specs=out_spec,
        compiler_params=pltpu.CompilerParams(
            dimension_semantics=("parallel",),
            vmem_limit_bytes=32 * 1024 * 1024),
    )(x_p, eps_z_p, eps_y_p,
      w1_k, b1_k, wz_k, bz_k, wp1_k, bp1_k, wp_k, bp_k,
      wd_k, bd_k, wd1_k, bd1_k, wout_k, bout_k)

    out = out[:B]                                    # drop batch padding
    qz_mu = out[:, _O_QZMU:_O_QZMU + ZD]
    qz_std = out[:, _O_QZSTD:_O_QZSTD + ZD]
    z = out[:, _O_Z:_O_Z + ZD]
    qy_mu = out[:, _O_QYMU:_O_QYMU + YD]
    qy_std = out[:, _O_QYSTD:_O_QYSTD + YD]
    py_mu = out[:, _O_PYMU:_O_PYMU + YD]
    py_std = out[:, _O_PYSTD:_O_PYSTD + YD]
    ll = out[:, _O_LL]
    kl_z = out[:, _O_KLZ]
    kl_y = out[:, _O_KLY]
    elbo = out[:, _O_ELBO]

    return (-elbo.mean(), ll.mean(), kl_z.mean(), kl_y.mean(),
            qz_mu, qz_std, qy_mu, qy_std, py_mu, py_std, z)


def init_params(key):
    def dense(k, fan_in, fan_out):
        kw, _ = jax.random.split(k)
        w = jax.random.normal(kw, (fan_in, fan_out), jnp.float32) / math.sqrt(fan_in)
        b = jnp.zeros((1, fan_out), jnp.float32)
        return w, b

    keys = jax.random.split(key, 10)
    w1, b1 = dense(keys[0], D_IN, H)
    wzmu, bzmu = dense(keys[1], H, ZD)
    wzls, bzls = dense(keys[2], H, ZD)
    wp1, bp1 = dense(keys[3], ZD, H)
    wpmu, bpmu = dense(keys[4], H, YD)
    wpls, bpls = dense(keys[5], H, YD)
    wdmu, bdmu = dense(keys[6], H, YD)
    wdls, bdls = dense(keys[7], H, YD)
    wd1, bd1 = dense(keys[8], YD, H)
    wout, bout = dense(keys[9], H, D_IN)
    return [w1, b1, wzmu, bzmu, wzls, bzls,
            wp1, bp1, wpmu, bpmu, wpls, bpls,
            wdmu, bdmu, wdls, bdls,
            wd1, bd1, wout, bout]


if __name__ == "__main__":
    key = jax.random.PRNGKey(0)
    k_x, k_ez, k_ey, k_p = jax.random.split(key, 4)

    B = 2
    # NCHW image in [0, 1] (MNIST-like: 1x28x28), flattened to (B, 784).
    x_img = jax.random.uniform(k_x, (B, IMG_C, IMG_HW, IMG_HW), jnp.float32)
    x_flat = x_img.reshape(B, D_IN)
    eps_z = jax.random.normal(k_ez, (B, ZD), jnp.float32)
    eps_y = jax.random.normal(k_ey, (B, YD), jnp.float32)
    params = init_params(k_p)

    outs = lvae_forward(x_flat, eps_z, eps_y, params, wu_temp=1.0)
    outs = jax.block_until_ready(outs)

    (neg_elbo, ll_m, klz_m, kly_m,
     qz_mu, qz_std, qy_mu, qy_std, py_mu, py_std, z) = outs

    # Basic sanity on shapes / finiteness.
    assert neg_elbo.shape == () and bool(jnp.isfinite(neg_elbo))
    assert qz_mu.shape == (B, ZD) and qz_std.shape == (B, ZD)
    assert qy_mu.shape == (B, YD) and py_std.shape == (B, YD)
    assert z.shape == (B, ZD)
    for o in outs:
        assert bool(jnp.isfinite(o).all())
    assert bool((qz_std > 0).all()) and bool((qy_std > 0).all()) and bool((py_std > 0).all())

    print("KERNEL_OK")
</pallas_src>

<mosaic_0001>
module attributes {stable_mosaic.version = 11 : i64} {
  func.func @lvae_kernel(%arg0: i32, %arg1: memref<8x896xf32, #tpu.memory_space<vmem>>, %arg2: memref<8x8xf32, #tpu.memory_space<vmem>>, %arg3: memref<8x16xf32, #tpu.memory_space<vmem>>, %arg4: memref<896x32xbf16, #tpu.memory_space<vmem>>, %arg5: memref<1x32xf32, #tpu.memory_space<vmem>>, %arg6: memref<32x16xbf16, #tpu.memory_space<vmem>>, %arg7: memref<1x16xf32, #tpu.memory_space<vmem>>, %arg8: memref<8x32xbf16, #tpu.memory_space<vmem>>, %arg9: memref<1x32xf32, #tpu.memory_space<vmem>>, %arg10: memref<32x32xbf16, #tpu.memory_space<vmem>>, %arg11: memref<1x32xf32, #tpu.memory_space<vmem>>, %arg12: memref<32x32xbf16, #tpu.memory_space<vmem>>, %arg13: memref<1x32xf32, #tpu.memory_space<vmem>>, %arg14: memref<16x32xbf16, #tpu.memory_space<vmem>>, %arg15: memref<1x32xf32, #tpu.memory_space<vmem>>, %arg16: memref<32x896xbf16, #tpu.memory_space<vmem>>, %arg17: memref<1x896xf32, #tpu.memory_space<vmem>>, %arg18: memref<8x128xf32, #tpu.memory_space<vmem>>) attributes {dimension_semantics = [#tpu.dimension_semantics<parallel>], iteration_bounds = array<i64: 1>, scalar_prefetch = 0 : i64, scratch_operands = 0 : i64, tpu.core_type = #tpu.core_type<tc>, window_params = [{transform_indices = @transform_0, window_bounds = array<i64: 8, 896>}, {transform_indices = @transform_1, window_bounds = array<i64: 8, 8>}, {transform_indices = @transform_2, window_bounds = array<i64: 8, 16>}, {pipeline_mode = #tpu.pipeline_mode<synchronous>, transform_indices = @transform_3, window_bounds = array<i64: 896, 32>}, {pipeline_mode = #tpu.pipeline_mode<synchronous>, transform_indices = @transform_4, window_bounds = array<i64: 1, 32>}, {pipeline_mode = #tpu.pipeline_mode<synchronous>, transform_indices = @transform_5, window_bounds = array<i64: 32, 16>}, {pipeline_mode = #tpu.pipeline_mode<synchronous>, transform_indices = @transform_6, window_bounds = array<i64: 1, 16>}, {pipeline_mode = #tpu.pipeline_mode<synchronous>, transform_indices = @transform_7, window_bounds = array<i64: 8, 32>}, {pipeline_mode = #tpu.pipeline_mode<synchronous>, transform_indices = @transform_8, window_bounds = array<i64: 1, 32>}, {pipeline_mode = #tpu.pipeline_mode<synchronous>, transform_indices = @transform_9, window_bounds = array<i64: 32, 32>}, {pipeline_mode = #tpu.pipeline_mode<synchronous>, transform_indices = @transform_10, window_bounds = array<i64: 1, 32>}, {pipeline_mode = #tpu.pipeline_mode<synchronous>, transform_indices = @transform_11, window_bounds = array<i64: 32, 32>}, {pipeline_mode = #tpu.pipeline_mode<synchronous>, transform_indices = @transform_12, window_bounds = array<i64: 1, 32>}, {pipeline_mode = #tpu.pipeline_mode<synchronous>, transform_indices = @transform_13, window_bounds = array<i64: 16, 32>}, {pipeline_mode = #tpu.pipeline_mode<synchronous>, transform_indices = @transform_14, window_bounds = array<i64: 1, 32>}, {pipeline_mode = #tpu.pipeline_mode<synchronous>, transform_indices = @transform_15, window_bounds = array<i64: 32, 896>}, {pipeline_mode = #tpu.pipeline_mode<synchronous>, transform_indices = @transform_16, window_bounds = array<i64: 1, 896>}, {transform_indices = @transform_17, window_bounds = array<i64: 8, 128>}]} {
    %c0 = arith.constant 0 : index
    %c0_0 = arith.constant 0 : index
    %0 = vector.load %arg1[%c0, %c0_0] : memref<8x896xf32, #tpu.memory_space<vmem>>, vector<8x896xf32>
    %1 = arith.truncf %0 : vector<8x896xf32> to vector<8x896xbf16>
    %c0_1 = arith.constant 0 : index
    %c0_2 = arith.constant 0 : index
    %2 = vector.load %arg4[%c0_1, %c0_2] : memref<896x32xbf16, #tpu.memory_space<vmem>>, vector<896x32xbf16>
    %cst = arith.constant dense<0.000000e+00> : vector<8x32xf32>
    %3 = tpu.matmul %1, %2, %cst {dimension_numbers = #tpu.dot_dimension_numbers<[1], [0], [0], [1], [0, 0, 1, 1], [], []>} : vector<8x896xbf16>, vector<896x32xbf16>, vector<8x32xf32> -> vector<8x32xf32>
    %c0_3 = arith.constant 0 : index
    %c0_4 = arith.constant 0 : index
    %4 = vector.load %arg5[%c0_3, %c0_4] : memref<1x32xf32, #tpu.memory_space<vmem>>, vector<1x32xf32>
    %5 = vector.broadcast %4 : vector<1x32xf32> to vector<8x32xf32>
    %6 = arith.addf %3, %5 : vector<8x32xf32>
    %7 = math.tanh %6 : vector<8x32xf32>
    %8 = arith.truncf %7 : vector<8x32xf32> to vector<8x32xbf16>
    %c0_5 = arith.constant 0 : index
    %c0_6 = arith.constant 0 : index
    %9 = vector.load %arg6[%c0_5, %c0_6] : memref<32x16xbf16, #tpu.memory_space<vmem>>, vector<32x16xbf16>
    %cst_7 = arith.constant dense<0.000000e+00> : vector<8x16xf32>
    %10 = tpu.matmul %8, %9, %cst_7 {dimension_numbers = #tpu.dot_dimension_numbers<[1], [0], [0], [1], [0, 0, 1, 1], [], []>} : vector<8x32xbf16>, vector<32x16xbf16>, vector<8x16xf32> -> vector<8x16xf32>
    %c0_8 = arith.constant 0 : index
    %c0_9 = arith.constant 0 : index
    %11 = vector.load %arg7[%c0_8, %c0_9] : memref<1x16xf32, #tpu.memory_space<vmem>>, vector<1x16xf32>
    %12 = vector.broadcast %11 : vector<1x16xf32> to vector<8x16xf32>
    %13 = arith.addf %10, %12 : vector<8x16xf32>
    %14 = vector.extract_strided_slice %13 {offsets = [0, 0], sizes = [8, 8], strides = [1, 1]} : vector<8x16xf32> to vector<8x8xf32>
    %15 = vector.extract_strided_slice %13 {offsets = [0, 8], sizes = [8, 8], strides = [1, 1]} : vector<8x16xf32> to vector<8x8xf32>
    %cst_10 = arith.constant 0.000000e+00 : f32
    %16 = vector.broadcast %cst_10 : f32 to vector<8x8xf32>
    %17 = arith.maximumf %15, %16 : vector<8x8xf32>
    %18 = vector.broadcast %cst_10 : f32 to vector<8x8xf32>
    %19 = arith.subf %15, %18 : vector<8x8xf32>
    %20 = arith.cmpf one, %19, %19 : vector<8x8xf32>
    %21 = vector.broadcast %cst_10 : f32 to vector<8x8xf32>
    %22 = arith.addf %15, %21 : vector<8x8xf32>
    %23 = math.absf %19 : vector<8x8xf32>
    %cst_11 = arith.constant 0.000000e+00 : f32
    %24 = vector.broadcast %cst_11 : f32 to vector<8x8xf32>
    %25 = arith.subf %24, %23 : vector<8x8xf32>
    %26 = math.exp %25 : vector<8x8xf32>
    %27 = math.log1p %26 : vector<8x8xf32>
    %28 = arith.addf %17, %27 : vector<8x8xf32>
    %29 = arith.select %20, %22, %28 : vector<8x8xi1>, vector<8x8xf32>
    %cst_12 = arith.constant 9.99999974E-5 : f32
    %30 = vector.broadcast %cst_12 : f32 to vector<8x8xf32>
    %31 = arith.addf %29, %30 : vector<8x8xf32>
    %c0_13 = arith.constant 0 : index
    %c0_14 = arith.constant 0 : index
    %32 = vector.load %arg2[%c0_13, %c0_14] : memref<8x8xf32, #tpu.memory_space<vmem>>, vector<8x8xf32>
    %33 = arith.mulf %32, %31 : vector<8x8xf32>
    %34 = arith.addf %14, %33 : vector<8x8xf32>
    %35 = arith.truncf %34 : vector<8x8xf32> to vector<8x8xbf16>
    %c0_15 = arith.constant 0 : index
    %c0_16 = arith.constant 0 : index
    %36 = vector.load %arg8[%c0_15, %c0_16] : memref<8x32xbf16, #tpu.memory_space<vmem>>, vector<8x32xbf16>
    %cst_17 = arith.constant dense<0.000000e+00> : vector<8x32xf32>
    %37 = tpu.matmul %35, %36, %cst_17 {dimension_numbers = #tpu.dot_dimension_numbers<[1], [0], [0], [1], [0, 0, 1, 1], [], []>} : vector<8x8xbf16>, vector<8x32xbf16>, vector<8x32xf32> -> vector<8x32xf32>
    %c0_18 = arith.constant 0 : index
    %c0_19 = arith.constant 0 : index
    %38 = vector.load %arg9[%c0_18, %c0_19] : memref<1x32xf32, #tpu.memory_space<vmem>>, vector<1x32xf32>
    %39 = vector.broadcast %38 : vector<1x32xf32> to vector<8x32xf32>
    %40 = arith.addf %37, %39 : vector<8x32xf32>
    %41 = math.tanh %40 : vector<8x32xf32>
    %42 = arith.truncf %41 : vector<8x32xf32> to vector<8x32xbf16>
    %c0_20 = arith.constant 0 : index
    %c0_21 = arith.constant 0 : index
    %43 = vector.load %arg10[%c0_20, %c0_21] : memref<32x32xbf16, #tpu.memory_space<vmem>>, vector<32x32xbf16>
    %cst_22 = arith.constant dense<0.000000e+00> : vector<8x32xf32>
    %44 = tpu.matmul %42, %43, %cst_22 {dimension_numbers = #tpu.dot_dimension_numbers<[1], [0], [0], [1], [0, 0, 1, 1], [], []>} : vector<8x32xbf16>, vector<32x32xbf16>, vector<8x32xf32> -> vector<8x32xf32>
    %c0_23 = arith.constant 0 : index
    %c0_24 = arith.constant 0 : index
    %45 = vector.load %arg11[%c0_23, %c0_24] : memref<1x32xf32, #tpu.memory_space<vmem>>, vector<1x32xf32>
    %46 = vector.broadcast %45 : vector<1x32xf32> to vector<8x32xf32>
    %47 = arith.addf %44, %46 : vector<8x32xf32>
    %48 = vector.extract_strided_slice %47 {offsets = [0, 0], sizes = [8, 16], strides = [1, 1]} : vector<8x32xf32> to vector<8x16xf32>
    %49 = vector.extract_strided_slice %47 {offsets = [0, 16], sizes = [8, 16], strides = [1, 1]} : vector<8x32xf32> to vector<8x16xf32>
    %cst_25 = arith.constant 0.000000e+00 : f32
    %50 = vector.broadcast %cst_25 : f32 to vector<8x16xf32>
    %51 = arith.maximumf %49, %50 : vector<8x16xf32>
    %52 = vector.broadcast %cst_25 : f32 to vector<8x16xf32>
    %53 = arith.subf %49, %52 : vector<8x16xf32>
    %54 = arith.cmpf one, %53, %53 : vector<8x16xf32>
    %55 = vector.broadcast %cst_25 : f32 to vector<8x16xf32>
    %56 = arith.addf %49, %55 : vector<8x16xf32>
    %57 = math.absf %53 : vector<8x16xf32>
    %cst_26 = arith.constant 0.000000e+00 : f32
    %58 = vector.broadcast %cst_26 : f32 to vector<8x16xf32>
    %59 = arith.subf %58, %57 : vector<8x16xf32>
    %60 = math.exp %59 : vector<8x16xf32>
    %61 = math.log1p %60 : vector<8x16xf32>
    %62 = arith.addf %51, %61 : vector<8x16xf32>
    %63 = arith.select %54, %56, %62 : vector<8x16xi1>, vector<8x16xf32>
    %cst_27 = arith.constant 9.99999974E-5 : f32
    %64 = vector.broadcast %cst_27 : f32 to vector<8x16xf32>
    %65 = arith.addf %63, %64 : vector<8x16xf32>
    %c0_28 = arith.constant 0 : index
    %c0_29 = arith.constant 0 : index
    %66 = vector.load %arg12[%c0_28, %c0_29] : memref<32x32xbf16, #tpu.memory_space<vmem>>, vector<32x32xbf16>
    %cst_30 = arith.constant dense<0.000000e+00> : vector<8x32xf32>
    %67 = tpu.matmul %8, %66, %cst_30 {dimension_numbers = #tpu.dot_dimension_numbers<[1], [0], [0], [1], [0, 0, 1, 1], [], []>} : vector<8x32xbf16>, vector<32x32xbf16>, vector<8x32xf32> -> vector<8x32xf32>
    %c0_31 = arith.constant 0 : index
    %c0_32 = arith.constant 0 : index
    %68 = vector.load %arg13[%c0_31, %c0_32] : memref<1x32xf32, #tpu.memory_space<vmem>>, vector<1x32xf32>
    %69 = vector.broadcast %68 : vector<1x32xf32> to vector<8x32xf32>
    %70 = arith.addf %67, %69 : vector<8x32xf32>
    %71 = vector.extract_strided_slice %70 {offsets = [0, 0], sizes = [8, 16], strides = [1, 1]} : vector<8x32xf32> to vector<8x16xf32>
    %72 = vector.extract_strided_slice %70 {offsets = [0, 16], sizes = [8, 16], strides = [1, 1]} : vector<8x32xf32> to vector<8x16xf32>
    %cst_33 = arith.constant 0.000000e+00 : f32
    %73 = vector.broadcast %cst_33 : f32 to vector<8x16xf32>
    %74 = arith.maximumf %72, %73 : vector<8x16xf32>
    %75 = vector.broadcast %cst_33 : f32 to vector<8x16xf32>
    %76 = arith.subf %72, %75 : vector<8x16xf32>
    %77 = arith.cmpf one, %76, %76 : vector<8x16xf32>
    %78 = vector.broadcast %cst_33 : f32 to vector<8x16xf32>
    %79 = arith.addf %72, %78 : vector<8x16xf32>
    %80 = math.absf %76 : vector<8x16xf32>
    %cst_34 = arith.constant 0.000000e+00 : f32
    %81 = vector.broadcast %cst_34 : f32 to vector<8x16xf32>
    %82 = arith.subf %81, %80 : vector<8x16xf32>
    %83 = math.exp %82 : vector<8x16xf32>
    %84 = math.log1p %83 : vector<8x16xf32>
    %85 = arith.addf %74, %84 : vector<8x16xf32>
    %86 = arith.select %77, %79, %85 : vector<8x16xi1>, vector<8x16xf32>
    %cst_35 = arith.constant 9.99999974E-5 : f32
    %87 = vector.broadcast %cst_35 : f32 to vector<8x16xf32>
    %88 = arith.addf %86, %87 : vector<8x16xf32>
    %89 = arith.mulf %65, %65 : vector<8x16xf32>
    %90 = tpu.reciprocal %89 {approx = true} : vector<8x16xf32> -> vector<8x16xf32>
    %91 = arith.mulf %88, %88 : vector<8x16xf32>
    %92 = tpu.reciprocal %91 {approx = true} : vector<8x16xf32> -> vector<8x16xf32>
    %93 = arith.addf %90, %92 : vector<8x16xf32>
    %94 = math.rsqrt %93 : vector<8x16xf32>
    %95 = arith.mulf %48, %90 : vector<8x16xf32>
    %96 = arith.mulf %71, %92 : vector<8x16xf32>
    %97 = arith.addf %95, %96 : vector<8x16xf32>
    %98 = tpu.reciprocal %93 {approx = true} : vector<8x16xf32> -> vector<8x16xf32>
    %99 = arith.mulf %97, %98 : vector<8x16xf32>
    %c0_36 = arith.constant 0 : index
    %c0_37 = arith.constant 0 : index
    %100 = vector.load %arg3[%c0_36, %c0_37] : memref<8x16xf32, #tpu.memory_space<vmem>>, vector<8x16xf32>
    %101 = arith.mulf %100, %94 : vector<8x16xf32>
    %102 = arith.addf %99, %101 : vector<8x16xf32>
    %103 = arith.truncf %102 : vector<8x16xf32> to vector<8x16xbf16>
    %c0_38 = arith.constant 0 : index
    %c0_39 = arith.constant 0 : index
    %104 = vector.load %arg14[%c0_38, %c0_39] : memref<16x32xbf16, #tpu.memory_space<vmem>>, vector<16x32xbf16>
    %cst_40 = arith.constant dense<0.000000e+00> : vector<8x32xf32>
    %105 = tpu.matmul %103, %104, %cst_40 {dimension_numbers = #tpu.dot_dimension_numbers<[1], [0], [0], [1], [0, 0, 1, 1], [], []>} : vector<8x16xbf16>, vector<16x32xbf16>, vector<8x32xf32> -> vector<8x32xf32>
    %c0_41 = arith.constant 0 : index
    %c0_42 = arith.constant 0 : index
    %106 = vector.load %arg15[%c0_41, %c0_42] : memref<1x32xf32, #tpu.memory_space<vmem>>, vector<1x32xf32>
    %107 = vector.broadcast %106 : vector<1x32xf32> to vector<8x32xf32>
    %108 = arith.addf %105, %107 : vector<8x32xf32>
    %109 = math.tanh %108 : vector<8x32xf32>
    %110 = arith.truncf %109 : vector<8x32xf32> to vector<8x32xbf16>
    %c0_43 = arith.constant 0 : index
    %c0_44 = arith.constant 0 : index
    %111 = vector.load %arg16[%c0_43, %c0_44] : memref<32x896xbf16, #tpu.memory_space<vmem>>, vector<32x896xbf16>
    %cst_45 = arith.constant dense<0.000000e+00> : vector<8x896xf32>
    %112 = tpu.matmul %110, %111, %cst_45 {dimension_numbers = #tpu.dot_dimension_numbers<[1], [0], [0], [1], [0, 0, 1, 1], [], []>} : vector<8x32xbf16>, vector<32x896xbf16>, vector<8x896xf32> -> vector<8x896xf32>
    %c0_46 = arith.constant 0 : index
    %c0_47 = arith.constant 0 : index
    %113 = vector.load %arg17[%c0_46, %c0_47] : memref<1x896xf32, #tpu.memory_space<vmem>>, vector<1x896xf32>
    %114 = vector.broadcast %113 : vector<1x896xf32> to vector<8x896xf32>
    %115 = arith.addf %112, %114 : vector<8x896xf32>
    %116 = arith.negf %115 : vector<8x896xf32>
    %117 = math.exp %116 : vector<8x896xf32>
    %cst_48 = arith.constant 1.000000e+00 : f32
    %118 = vector.broadcast %cst_48 : f32 to vector<8x896xf32>
    %119 = arith.addf %118, %117 : vector<8x896xf32>
    %120 = arith.divf %118, %119 : vector<8x896xf32>
    %121 = tpu.iota {dimensions = array<i32: 1>} : vector<1x896xi32>
    %c784_i32 = arith.constant 784 : i32
    %122 = vector.broadcast %c784_i32 : i32 to vector<1x896xi32>
    %123 = arith.cmpi slt, %121, %122 : vector<1x896xi32>
    %124 = arith.subf %0, %120 : vector<8x896xf32>
    %cst_49 = arith.constant 0.000000e+00 : f32
    %125 = vector.shape_cast %123 : vector<1x896xi1> to vector<1x896xi1>
    %126 = vector.broadcast %125 : vector<1x896xi1> to vector<8x896xi1>
    %127 = vector.broadcast %cst_49 : f32 to vector<8x896xf32>
    %128 = arith.select %126, %124, %127 : vector<8x896xi1>, vector<8x896xf32>
    %129 = arith.mulf %128, %128 : vector<8x896xf32>
    %cst_50 = arith.constant dense<0.000000e+00> : vector<8xf32>
    %130 = vector.multi_reduction <add>, %129, %cst_50 [1] : vector<8x896xf32> to vector<8xf32>
    %131 = vector.shape_cast %130 : vector<8xf32> to vector<8x1xf32>
    %cst_51 = arith.constant 555.555542 : f32
    %132 = vector.broadcast %cst_51 : f32 to vector<8x1xf32>
    %133 = arith.mulf %132, %131 : vector<8x1xf32>
    %cst_52 = arith.constant -2028.6936 : f32
    %134 = vector.broadcast %cst_52 : f32 to vector<8x1xf32>
    %135 = arith.addf %133, %134 : vector<8x1xf32>
    %cst_53 = arith.constant 0.000000e+00 : f32
    %136 = vector.broadcast %cst_53 : f32 to vector<8x1xf32>
    %137 = arith.subf %136, %135 : vector<8x1xf32>
    %138 = math.log %31 : vector<8x8xf32>
    %cst_54 = arith.constant 0.000000e+00 : f32
    %139 = vector.broadcast %cst_54 : f32 to vector<8x8xf32>
    %140 = arith.subf %139, %138 : vector<8x8xf32>
    %141 = arith.mulf %31, %31 : vector<8x8xf32>
    %142 = arith.mulf %14, %14 : vector<8x8xf32>
    %143 = arith.addf %141, %142 : vector<8x8xf32>
    %cst_55 = arith.constant 5.000000e-01 : f32
    %144 = vector.broadcast %cst_55 : f32 to vector<8x8xf32>
    %145 = arith.mulf %144, %143 : vector<8x8xf32>
    %146 = arith.addf %140, %145 : vector<8x8xf32>
    %cst_56 = arith.constant 5.000000e-01 : f32
    %147 = vector.broadcast %cst_56 : f32 to vector<8x8xf32>
    %148 = arith.subf %146, %147 : vector<8x8xf32>
    %cst_57 = arith.constant dense<0.000000e+00> : vector<8xf32>
    %149 = vector.multi_reduction <add>, %148, %cst_57 [1] : vector<8x8xf32> to vector<8xf32>
    %150 = vector.shape_cast %149 : vector<8xf32> to vector<8x1xf32>
    %151 = arith.subf %99, %48 : vector<8x16xf32>
    %152 = math.log %65 : vector<8x16xf32>
    %153 = math.log %94 : vector<8x16xf32>
    %154 = arith.subf %152, %153 : vector<8x16xf32>
    %155 = arith.mulf %94, %94 : vector<8x16xf32>
    %156 = arith.mulf %151, %151 : vector<8x16xf32>
    %157 = arith.addf %155, %156 : vector<8x16xf32>
    %cst_58 = arith.constant 5.000000e-01 : f32
    %158 = vector.broadcast %cst_58 : f32 to vector<8x16xf32>
    %159 = arith.mulf %158, %157 : vector<8x16xf32>
    %160 = arith.mulf %159, %90 : vector<8x16xf32>
    %161 = arith.addf %154, %160 : vector<8x16xf32>
    %cst_59 = arith.constant 5.000000e-01 : f32
    %162 = vector.broadcast %cst_59 : f32 to vector<8x16xf32>
    %163 = arith.subf %161, %162 : vector<8x16xf32>
    %cst_60 = arith.constant dense<0.000000e+00> : vector<8xf32>
    %164 = vector.multi_reduction <add>, %163, %cst_60 [1] : vector<8x16xf32> to vector<8xf32>
    %165 = vector.shape_cast %164 : vector<8xf32> to vector<8x1xf32>
    %cst_61 = arith.constant 1.000000e+00 : f32
    %166 = vector.broadcast %cst_61 : f32 to vector<8x1xf32>
    %167 = arith.mulf %166, %165 : vector<8x1xf32>
    %168 = arith.subf %137, %167 : vector<8x1xf32>
    %cst_62 = arith.constant 1.000000e+00 : f32
    %169 = vector.broadcast %cst_62 : f32 to vector<8x1xf32>
    %170 = arith.mulf %169, %150 : vector<8x1xf32>
    %171 = arith.subf %168, %170 : vector<8x1xf32>
    %cst_63 = arith.constant 0.000000e+00 : f32
    %172 = vector.broadcast %cst_63 : f32 to vector<8x36xf32>
    %173 = tpu.concatenate %14, %31, %34, %99, %94, %48, %65, %137, %150, %165, %171, %172 in 1 : vector<8x8xf32>, vector<8x8xf32>, vector<8x8xf32>, vector<8x16xf32>, vector<8x16xf32>, vector<8x16xf32>, vector<8x16xf32>, vector<8x1xf32>, vector<8x1xf32>, vector<8x1xf32>, vector<8x1xf32>, vector<8x36xf32> -> vector<8x128xf32>
    %c0_64 = arith.constant 0 : index
    %c0_65 = arith.constant 0 : index
    %174 = vector.load %arg18[%c0_64, %c0_65] : memref<8x128xf32, #tpu.memory_space<vmem>>, vector<8x128xf32>
    tpu.vector_store %arg18[%c0_64, %c0_65], %173 {strides = array<i32>} : memref<8x128xf32, #tpu.memory_space<vmem>>, vector<8x128xf32>,
    return
  }
  func.func @transform_0(%arg0: i32) -> (i32, i32) {
    %c0_i32 = arith.constant 0 : i32
    %c0_i32_0 = arith.constant 0 : i32
    return %arg0, %c0_i32 : i32, i32
  }
  func.func @transform_1(%arg0: i32) -> (i32, i32) {
    %c0_i32 = arith.constant 0 : i32
    %c0_i32_0 = arith.constant 0 : i32
    return %arg0, %c0_i32 : i32, i32
  }
  func.func @transform_2(%arg0: i32) -> (i32, i32) {
    %c0_i32 = arith.constant 0 : i32
    %c0_i32_0 = arith.constant 0 : i32
    return %arg0, %c0_i32 : i32, i32
  }
  func.func @transform_3(%arg0: i32) -> (i32, i32) {
    %c0_i32 = arith.constant 0 : i32
    %c0_i32_0 = arith.constant 0 : i32
    %c0_i32_1 = arith.constant 0 : i32
    return %c0_i32, %c0_i32_0 : i32, i32
  }
  func.func @transform_4(%arg0: i32) -> (i32, i32) {
    %c0_i32 = arith.constant 0 : i32
    %c0_i32_0 = arith.constant 0 : i32
    %c0_i32_1 = arith.constant 0 : i32
    return %c0_i32, %c0_i32_0 : i32, i32
  }
  func.func @transform_5(%arg0: i32) -> (i32, i32) {
    %c0_i32 = arith.constant 0 : i32
    %c0_i32_0 = arith.constant 0 : i32
    %c0_i32_1 = arith.constant 0 : i32
    return %c0_i32, %c0_i32_0 : i32, i32
  }
  func.func @transform_6(%arg0: i32) -> (i32, i32) {
    %c0_i32 = arith.constant 0 : i32
    %c0_i32_0 = arith.constant 0 : i32
    %c0_i32_1 = arith.constant 0 : i32
    return %c0_i32, %c0_i32_0 : i32, i32
  }
  func.func @transform_7(%arg0: i32) -> (i32, i32) {
    %c0_i32 = arith.constant 0 : i32
    %c0_i32_0 = arith.constant 0 : i32
    %c0_i32_1 = arith.constant 0 : i32
    return %c0_i32, %c0_i32_0 : i32, i32
  }
  func.func @transform_8(%arg0: i32) -> (i32, i32) {
    %c0_i32 = arith.constant 0 : i32
    %c0_i32_0 = arith.constant 0 : i32
    %c0_i32_1 = arith.constant 0 : i32
    return %c0_i32, %c0_i32_0 : i32, i32
  }
  func.func @transform_9(%arg0: i32) -> (i32, i32) {
    %c0_i32 = arith.constant 0 : i32
    %c0_i32_0 = arith.constant 0 : i32
    %c0_i32_1 = arith.constant 0 : i32
    return %c0_i32, %c0_i32_0 : i32, i32
  }
  func.func @transform_10(%arg0: i32) -> (i32, i32) {
    %c0_i32 = arith.constant 0 : i32
    %c0_i32_0 = arith.constant 0 : i32
    %c0_i32_1 = arith.constant 0 : i32
    return %c0_i32, %c0_i32_0 : i32, i32
  }
  func.func @transform_11(%arg0: i32) -> (i32, i32) {
    %c0_i32 = arith.constant 0 : i32
    %c0_i32_0 = arith.constant 0 : i32
    %c0_i32_1 = arith.constant 0 : i32
    return %c0_i32, %c0_i32_0 : i32, i32
  }
  func.func @transform_12(%arg0: i32) -> (i32, i32) {
    %c0_i32 = arith.constant 0 : i32
    %c0_i32_0 = arith.constant 0 : i32
    %c0_i32_1 = arith.constant 0 : i32
    return %c0_i32, %c0_i32_0 : i32, i32
  }
  func.func @transform_13(%arg0: i32) -> (i32, i32) {
    %c0_i32 = arith.constant 0 : i32
    %c0_i32_0 = arith.constant 0 : i32
    %c0_i32_1 = arith.constant 0 : i32
    return %c0_i32, %c0_i32_0 : i32, i32
  }
  func.func @transform_14(%arg0: i32) -> (i32, i32) {
    %c0_i32 = arith.constant 0 : i32
    %c0_i32_0 = arith.constant 0 : i32
    %c0_i32_1 = arith.constant 0 : i32
    return %c0_i32, %c0_i32_0 : i32, i32
  }
  func.func @transform_15(%arg0: i32) -> (i32, i32) {
    %c0_i32 = arith.constant 0 : i32
    %c0_i32_0 = arith.constant 0 : i32
    %c0_i32_1 = arith.constant 0 : i32
    return %c0_i32, %c0_i32_0 : i32, i32
  }
  func.func @transform_16(%arg0: i32) -> (i32, i32) {
    %c0_i32 = arith.constant 0 : i32
    %c0_i32_0 = arith.constant 0 : i32
    %c0_i32_1 = arith.constant 0 : i32
    return %c0_i32, %c0_i32_0 : i32, i32
  }
  func.func @transform_17(%arg0: i32) -> (i32, i32) {
    %c0_i32 = arith.constant 0 : i32
    %c0_i32_0 = arith.constant 0 : i32
    return %arg0, %c0_i32 : i32, i32
  }
}

</mosaic_0001>

<llo_original>
// kernel: tpu_custom_call.1
$region0: #{tpu_custom_call.1}
  #allocation0 [shape = 'u32[]', space=smem, size = 0x4, offset = 0x4, fixed_abs, tag = 'smem constant byte address 0x4 - core index']
  #allocation1 [shape = 'u32[144,128]{1,0:T(1,128)}', space=vmem, size = 0x12000, scoped, tag = 'internal scratch']
  %s0 = inlined_call_operand.vmem [shape: f32[8,896], index: 0, kind: input, shape index: {}]
  %s1 = inlined_call_operand.vmem [shape: f32[8,8], index: 1, kind: input, shape index: {}]
  %s2 = inlined_call_operand.vmem [shape: f32[8,16], index: 2, kind: input, shape index: {}]
  %s3 = inlined_call_operand.vmem [shape: bf16[896,32], index: 3, kind: input, shape index: {}]
  %s4 = inlined_call_operand.vmem [shape: f32[1,32], index: 4, kind: input, shape index: {}]
  %s5 = inlined_call_operand.vmem [shape: bf16[32,16], index: 5, kind: input, shape index: {}]
  %s6 = inlined_call_operand.vmem [shape: f32[1,16], index: 6, kind: input, shape index: {}]
  %s7 = inlined_call_operand.vmem [shape: bf16[8,32], index: 7, kind: input, shape index: {}]
  %s8 = inlined_call_operand.vmem [shape: f32[1,32], index: 8, kind: input, shape index: {}]
  %s9 = inlined_call_operand.vmem [shape: bf16[32,32], index: 9, kind: input, shape index: {}]
  %s10 = inlined_call_operand.vmem [shape: f32[1,32], index: 10, kind: input, shape index: {}]
  %s11 = inlined_call_operand.vmem [shape: bf16[32,32], index: 11, kind: input, shape index: {}]
  %s12 = inlined_call_operand.vmem [shape: f32[1,32], index: 12, kind: input, shape index: {}]
  %s13 = inlined_call_operand.vmem [shape: bf16[16,32], index: 13, kind: input, shape index: {}]
  %s14 = inlined_call_operand.vmem [shape: f32[1,32], index: 14, kind: input, shape index: {}]
  %s15 = inlined_call_operand.vmem [shape: bf16[32,896], index: 15, kind: input, shape index: {}]
  %s16 = inlined_call_operand.vmem [shape: f32[1,896], index: 16, kind: input, shape index: {}]
  %s17 = inlined_call_operand.hbm [shape: f32[8,128], index: 17, kind: output, shape index: {}]
  %s18 = sld [smem:[#allocation0]]
  $region78: #{tpu_custom_call.1} parent=0
    _
  %s20 = ssub.s32 1, %s18
  %s21 = scalar_select 0, %s20, %s18
  $region1: #{tpu_custom_call.1} parent=0
    #allocation2 [shape = 'u8[4096]{0}', space=vmem, size = 0x1000, scoped, tag = 'output window, operand 0, single buffered']
    #allocation3 [shape = 's32[1]{0}', space=sflag, size = 0x4, scoped, tag = 'scoped memory for tpu_custom_call.1']
    %22 = vsyncpa [#allocation3], 0
    // Predicated region
    $region2: #{tpu_custom_call.1} parent=1 // pred_check
      _
    $region3: #{tpu_custom_call.1} parent=1 // pred_check_branch
      %24 = sbr.rel (0) target = $region5
    $region4: #{tpu_custom_call.1} parent=1 // pred_region
      _
    $region5: #{tpu_custom_call.1} parent=1 // pred_fallthru
      _
    // Predicated region
    $region6: #{tpu_custom_call.1} parent=1 // pred_check
      _
    $region7: #{tpu_custom_call.1} parent=1 // pred_check_branch
      %26 = sbr.rel (0) target = $region9
    $region8: #{tpu_custom_call.1} parent=1 // pred_region
      _
    $region9: #{tpu_custom_call.1} parent=1 // pred_fallthru
      _
    // Predicated region
    $region10: #{tpu_custom_call.1} parent=1 // pred_check
      _
    $region11: #{tpu_custom_call.1} parent=1 // pred_check_branch
      %28 = sbr.rel (0) target = $region13
    $region12: #{tpu_custom_call.1} parent=1 // pred_region
      _
    $region13: #{tpu_custom_call.1} parent=1 // pred_fallthru
      _
    // Predicated region
    $region14: #{tpu_custom_call.1} parent=1 // pred_check
      _
    $region15: #{tpu_custom_call.1} parent=1 // pred_check_branch
      %30 = sbr.rel (0) target = $region17
    $region16: #{tpu_custom_call.1} parent=1 // pred_region
      _
    $region17: #{tpu_custom_call.1} parent=1 // pred_fallthru
      _
    // Predicated region
    $region18: #{tpu_custom_call.1} parent=1 // pred_check
      _
    $region19: #{tpu_custom_call.1} parent=1 // pred_check_branch
      %32 = sbr.rel (0) target = $region21
    $region20: #{tpu_custom_call.1} parent=1 // pred_region
      _
    $region21: #{tpu_custom_call.1} parent=1 // pred_fallthru
      _
    // Predicated region
    $region22: #{tpu_custom_call.1} parent=1 // pred_check
      _
    $region23: #{tpu_custom_call.1} parent=1 // pred_check_branch
      %34 = sbr.rel (0) target = $region25
    $region24: #{tpu_custom_call.1} parent=1 // pred_region
      _
    $region25: #{tpu_custom_call.1} parent=1 // pred_fallthru
      _
    // Predicated region
    $region26: #{tpu_custom_call.1} parent=1 // pred_check
      _
    $region27: #{tpu_custom_call.1} parent=1 // pred_check_branch
      %36 = sbr.rel (0) target = $region29
    $region28: #{tpu_custom_call.1} parent=1 // pred_region
      _
    $region29: #{tpu_custom_call.1} parent=1 // pred_fallthru
      _
    // Predicated region
    $region30: #{tpu_custom_call.1} parent=1 // pred_check
      _
    $region31: #{tpu_custom_call.1} parent=1 // pred_check_branch
      %38 = sbr.rel (0) target = $region33
    $region32: #{tpu_custom_call.1} parent=1 // pred_region
      _
    $region33: #{tpu_custom_call.1} parent=1 // pred_fallthru
      _
    // Predicated region
    $region34: #{tpu_custom_call.1} parent=1 // pred_check
      _
    $region35: #{tpu_custom_call.1} parent=1 // pred_check_branch
      %40 = sbr.rel (0) target = $region37
    $region36: #{tpu_custom_call.1} parent=1 // pred_region
      _
    $region37: #{tpu_custom_call.1} parent=1 // pred_fallthru
      _
    // Predicated region
    $region38: #{tpu_custom_call.1} parent=1 // pred_check
      _
    $region39: #{tpu_custom_call.1} parent=1 // pred_check_branch
      %42 = sbr.rel (0) target = $region41
    $region40: #{tpu_custom_call.1} parent=1 // pred_region
      _
    $region41: #{tpu_custom_call.1} parent=1 // pred_fallthru
      _
    // Predicated region
    $region42: #{tpu_custom_call.1} parent=1 // pred_check
      _
    $region43: #{tpu_custom_call.1} parent=1 // pred_check_branch
      %44 = sbr.rel (0) target = $region45
    $region44: #{tpu_custom_call.1} parent=1 // pred_region
      _
    $region45: #{tpu_custom_call.1} parent=1 // pred_fallthru
      _
    // Predicated region
    $region46: #{tpu_custom_call.1} parent=1 // pred_check
      _
    $region47: #{tpu_custom_call.1} parent=1 // pred_check_branch
      %46 = sbr.rel (0) target = $region49
    $region48: #{tpu_custom_call.1} parent=1 // pred_region
      _
    $region49: #{tpu_custom_call.1} parent=1 // pred_fallthru
      _
    // Predicated region
    $region50: #{tpu_custom_call.1} parent=1 // pred_check
      _
    $region51: #{tpu_custom_call.1} parent=1 // pred_check_branch
      %48 = sbr.rel (0) target = $region53
    $region52: #{tpu_custom_call.1} parent=1 // pred_region
      _
    $region53: #{tpu_custom_call.1} parent=1 // pred_fallthru
      _
    // Predicated region
    $region54: #{tpu_custom_call.1} parent=1 // pred_check
      _
    $region55: #{tpu_custom_call.1} parent=1 // pred_check_branch
      %50 = sbr.rel (0) target = $region57
    $region56: #{tpu_custom_call.1} parent=1 // pred_region
      _
    $region57: #{tpu_custom_call.1} parent=1 // pred_fallthru
      _
    // Predicated region
    $region58: #{tpu_custom_call.1} parent=1 // pred_check
      _
    $region59: #{tpu_custom_call.1} parent=1 // pred_check_branch
      %52 = sbr.rel (0) target = $region61
    $region60: #{tpu_custom_call.1} parent=1 // pred_region
      _
    $region61: #{tpu_custom_call.1} parent=1 // pred_fallthru
      _
    // Predicated region
    $region62: #{tpu_custom_call.1} parent=1 // pred_check
      _
    $region63: #{tpu_custom_call.1} parent=1 // pred_check_branch
      %54 = sbr.rel (0) target = $region65
    $region64: #{tpu_custom_call.1} parent=1 // pred_region
      _
    $region65: #{tpu_custom_call.1} parent=1 // pred_fallthru
      _
    // Predicated region
    $region66: #{tpu_custom_call.1} parent=1 // pred_check
      _
    $region67: #{tpu_custom_call.1} parent=1 // pred_check_branch
      %56 = sbr.rel (0) target = $region69
    $region68: #{tpu_custom_call.1} parent=1 // pred_region
      _
    $region69: #{tpu_custom_call.1} parent=1 // pred_fallthru
      _
    %v58 = vld [vmem:[%s0] sm:$0xff]
    %v59 = vld [vmem:[%s0 + $0x8] sm:$0xff]
    %v60 = vld [vmem:[%s0 + $0x10] sm:$0xff]
    %v61 = vld [vmem:[%s0 + $0x18] sm:$0xff]
    %v62 = vld [vmem:[%s0 + $0x20] sm:$0xff]
    %v63 = vld [vmem:[%s0 + $0x28] sm:$0xff]
    %v64 = vld [vmem:[%s0 + $0x30] sm:$0xff]
    %v65 = vpack.c.bf16 %v58, %v58
    %v66 = vpack.c.bf16 %v59, %v59
    %v67 = vpack.c.bf16 %v60, %v60
    %v68 = vpack.c.bf16 %v61, %v61
    %v69 = vpack.c.bf16 %v62, %v62
    %v70 = vpack.c.bf16 %v63, %v63
    %v71 = vpack.c.bf16 %v64, %v64
    %v72 = vld [vmem:[%s3] sm:$0xf]
    %v73 = vld [vmem:[%s3 + $0x4] sm:$0xf]
    %v74 = vld [vmem:[%s3 + $0x8] sm:$0xf]
    %v75 = vld [vmem:[%s3 + $0xc] sm:$0xf]
    %v76 = vld [vmem:[%s3 + $0x10] sm:$0xf]
    %v77 = vld [vmem:[%s3 + $0x14] sm:$0xf]
    %v78 = vld [vmem:[%s3 + $0x18] sm:$0xf]
    %v79 = vld [vmem:[%s3 + $0x1c] sm:$0xf]
    %v80 = vld [vmem:[%s3 + $0x20] sm:$0xf]
    %v81 = vld [vmem:[%s3 + $0x24] sm:$0xf]
    %v82 = vld [vmem:[%s3 + $0x28] sm:$0xf]
    %v83 = vld [vmem:[%s3 + $0x2c] sm:$0xf]
    %v84 = vld [vmem:[%s3 + $0x30] sm:$0xf]
    %v85 = vld [vmem:[%s3 + $0x34] sm:$0xf]
    %v86 = vld [vmem:[%s3 + $0x38] sm:$0xf]
    %v87 = vld [vmem:[%s3 + $0x3c] sm:$0xf]
    %v88 = vld [vmem:[%s3 + $0x40] sm:$0xf]
    %v89 = vld [vmem:[%s3 + $0x44] sm:$0xf]
    %v90 = vld [vmem:[%s3 + $0x48] sm:$0xf]
    %v91 = vld [vmem:[%s3 + $0x4c] sm:$0xf]
    %v92 = vld [vmem:[%s3 + $0x50] sm:$0xf]
    %v93 = vld [vmem:[%s3 + $0x54] sm:$0xf]
    %v94 = vld [vmem:[%s3 + $0x58] sm:$0xf]
    %v95 = vld [vmem:[%s3 + $0x5c] sm:$0xf]
    %v96 = vld [vmem:[%s3 + $0x60] sm:$0xf]
    %v97 = vld [vmem:[%s3 + $0x64] sm:$0xf]
    %v98 = vld [vmem:[%s3 + $0x68] sm:$0xf]
    %v99 = vld [vmem:[%s3 + $0x6c] sm:$0xf]
    %v100 = vld [vmem:[%s3 + $0x70] sm:$0xf]
    %v101 = vld [vmem:[%s3 + $0x74] sm:$0xf]
    %v102 = vld [vmem:[%s3 + $0x78] sm:$0xf]
    %v103 = vld [vmem:[%s3 + $0x7c] sm:$0xf]
    %v104 = vld [vmem:[%s3 + $0x80] sm:$0xf]
    %v105 = vld [vmem:[%s3 + $0x84] sm:$0xf]
    %v106 = vld [vmem:[%s3 + $0x88] sm:$0xf]
    %v107 = vld [vmem:[%s3 + $0x8c] sm:$0xf]
    %v108 = vld [vmem:[%s3 + $0x90] sm:$0xf]
    %v109 = vld [vmem:[%s3 + $0x94] sm:$0xf]
    %v110 = vld [vmem:[%s3 + $0x98] sm:$0xf]
    %v111 = vld [vmem:[%s3 + $0x9c] sm:$0xf]
    %v112 = vld [vmem:[%s3 + $0xa0] sm:$0xf]
    %v113 = vld [vmem:[%s3 + $0xa4] sm:$0xf]
    %v114 = vld [vmem:[%s3 + $0xa8] sm:$0xf]
    %v115 = vld [vmem:[%s3 + $0xac] sm:$0xf]
    %v116 = vld [vmem:[%s3 + $0xb0] sm:$0xf]
    %v117 = vld [vmem:[%s3 + $0xb4] sm:$0xf]
    %v118 = vld [vmem:[%s3 + $0xb8] sm:$0xf]
    %v119 = vld [vmem:[%s3 + $0xbc] sm:$0xf]
    %v120 = vld [vmem:[%s3 + $0xc0] sm:$0xf]
    %v121 = vld [vmem:[%s3 + $0xc4] sm:$0xf]
    %v122 = vld [vmem:[%s3 + $0xc8] sm:$0xf]
    %v123 = vld [vmem:[%s3 + $0xcc] sm:$0xf]
    %v124 = vld [vmem:[%s3 + $0xd0] sm:$0xf]
    %v125 = vld [vmem:[%s3 + $0xd4] sm:$0xf]
    %v126 = vld [vmem:[%s3 + $0xd8] sm:$0xf]
    %v127 = vld [vmem:[%s3 + $0xdc] sm:$0xf]
    %v128 = vld [vmem:[%s3 + $0xe0] sm:$0xf]
    %v129 = vld [vmem:[%s3 + $0xe4] sm:$0xf]
    %v130 = vld [vmem:[%s3 + $0xe8] sm:$0xf]
    %v131 = vld [vmem:[%s3 + $0xec] sm:$0xf]
    %v132 = vld [vmem:[%s3 + $0xf0] sm:$0xf]
    %v133 = vld [vmem:[%s3 + $0xf4] sm:$0xf]
    %v134 = vld [vmem:[%s3 + $0xf8] sm:$0xf]
    %v135 = vld [vmem:[%s3 + $0xfc] sm:$0xf]
    %v136 = vld [vmem:[%s3 + $0x100] sm:$0xf]
    %v137 = vld [vmem:[%s3 + $0x104] sm:$0xf]
    %v138 = vld [vmem:[%s3 + $0x108] sm:$0xf]
    %v139 = vld [vmem:[%s3 + $0x10c] sm:$0xf]
    %v140 = vld [vmem:[%s3 + $0x110] sm:$0xf]
    %v141 = vld [vmem:[%s3 + $0x114] sm:$0xf]
    %v142 = vld [vmem:[%s3 + $0x118] sm:$0xf]
    %v143 = vld [vmem:[%s3 + $0x11c] sm:$0xf]
    %v144 = vld [vmem:[%s3 + $0x120] sm:$0xf]
    %v145 = vld [vmem:[%s3 + $0x124] sm:$0xf]
    %v146 = vld [vmem:[%s3 + $0x128] sm:$0xf]
    %v147 = vld [vmem:[%s3 + $0x12c] sm:$0xf]
    %v148 = vld [vmem:[%s3 + $0x130] sm:$0xf]
    %v149 = vld [vmem:[%s3 + $0x134] sm:$0xf]
    %v150 = vld [vmem:[%s3 + $0x138] sm:$0xf]
    %v151 = vld [vmem:[%s3 + $0x13c] sm:$0xf]
    %v152 = vld [vmem:[%s3 + $0x140] sm:$0xf]
    %v153 = vld [vmem:[%s3 + $0x144] sm:$0xf]
    %v154 = vld [vmem:[%s3 + $0x148] sm:$0xf]
    %v155 = vld [vmem:[%s3 + $0x14c] sm:$0xf]
    %v156 = vld [vmem:[%s3 + $0x150] sm:$0xf]
    %v157 = vld [vmem:[%s3 + $0x154] sm:$0xf]
    %v158 = vld [vmem:[%s3 + $0x158] sm:$0xf]
    %v159 = vld [vmem:[%s3 + $0x15c] sm:$0xf]
    %v160 = vld [vmem:[%s3 + $0x160] sm:$0xf]
    %v161 = vld [vmem:[%s3 + $0x164] sm:$0xf]
    %v162 = vld [vmem:[%s3 + $0x168] sm:$0xf]
    %v163 = vld [vmem:[%s3 + $0x16c] sm:$0xf]
    %v164 = vld [vmem:[%s3 + $0x170] sm:$0xf]
    %v165 = vld [vmem:[%s3 + $0x174] sm:$0xf]
    %v166 = vld [vmem:[%s3 + $0x178] sm:$0xf]
    %v167 = vld [vmem:[%s3 + $0x17c] sm:$0xf]
    %v168 = vld [vmem:[%s3 + $0x180] sm:$0xf]
    %v169 = vld [vmem:[%s3 + $0x184] sm:$0xf]
    %v170 = vld [vmem:[%s3 + $0x188] sm:$0xf]
    %v171 = vld [vmem:[%s3 + $0x18c] sm:$0xf]
    %v172 = vld [vmem:[%s3 + $0x190] sm:$0xf]
    %v173 = vld [vmem:[%s3 + $0x194] sm:$0xf]
    %v174 = vld [vmem:[%s3 + $0x198] sm:$0xf]
    %v175 = vld [vmem:[%s3 + $0x19c] sm:$0xf]
    %v176 = vld [vmem:[%s3 + $0x1a0] sm:$0xf]
    %v177 = vld [vmem:[%s3 + $0x1a4] sm:$0xf]
    %v178 = vld [vmem:[%s3 + $0x1a8] sm:$0xf]
    %v179 = vld [vmem:[%s3 + $0x1ac] sm:$0xf]
    %v180 = vld [vmem:[%s3 + $0x1b0] sm:$0xf]
    %v181 = vld [vmem:[%s3 + $0x1b4] sm:$0xf]
    %v182 = vld [vmem:[%s3 + $0x1b8] sm:$0xf]
    %v183 = vld [vmem:[%s3 + $0x1bc] sm:$0xf]
    %v184 = vld [vmem:[%s4] sm:$0x1]
    %v186 = vlaneseq
    %v187 = vshrl.u32 %v186, 7
    %v188 = vsub.s32 0, %v187
    %v189 = vrot.slane %v184, %v188
    %v303 = vunpack.c.l.b16 %v72
    %v304 = vunpack.c.l.b16 %v73
    %v305 = vunpack.c.l.b16 %v74
    %v306 = vunpack.c.l.b16 %v75
    %v307 = vunpack.c.l.b16 %v76
    %v308 = vunpack.c.l.b16 %v77
    %v309 = vunpack.c.l.b16 %v78
    %v310 = vunpack.c.l.b16 %v79
    %v311 = vunpack.c.l.b16 %v80
    %v312 = vunpack.c.l.b16 %v81
    %v313 = vunpack.c.l.b16 %v82
    %v314 = vunpack.c.l.b16 %v83
    %v315 = vunpack.c.l.b16 %v84
    %v316 = vunpack.c.l.b16 %v85
    %v317 = vunpack.c.l.b16 %v86
    %v318 = vunpack.c.l.b16 %v87
    %v319 = vunpack.c.l.b16 %v88
    %v320 = vunpack.c.l.b16 %v89
    %v321 = vunpack.c.l.b16 %v90
    %v322 = vunpack.c.l.b16 %v91
    %v323 = vunpack.c.l.b16 %v92
    %v324 = vunpack.c.l.b16 %v93
    %v325 = vunpack.c.l.b16 %v94
    %v326 = vunpack.c.l.b16 %v95
    %v327 = vunpack.c.l.b16 %v96
    %v328 = vunpack.c.l.b16 %v97
    %v329 = vunpack.c.l.b16 %v98
    %v330 = vunpack.c.l.b16 %v99
    %v331 = vunpack.c.l.b16 %v100
    %v332 = vunpack.c.l.b16 %v101
    %v333 = vunpack.c.l.b16 %v102
    %v334 = vunpack.c.l.b16 %v103
    %v335 = vunpack.c.l.b16 %v104
    %v336 = vunpack.c.l.b16 %v105
    %v337 = vunpack.c.l.b16 %v106
    %v338 = vunpack.c.l.b16 %v107
    %v339 = vunpack.c.l.b16 %v108
    %v340 = vunpack.c.l.b16 %v109
    %v341 = vunpack.c.l.b16 %v110
    %v342 = vunpack.c.l.b16 %v111
    %v343 = vunpack.c.l.b16 %v112
    %v344 = vunpack.c.l.b16 %v113
    %v345 = vunpack.c.l.b16 %v114
    %v346 = vunpack.c.l.b16 %v115
    %v347 = vunpack.c.l.b16 %v116
    %v348 = vunpack.c.l.b16 %v117
    %v349 = vunpack.c.l.b16 %v118
    %v350 = vunpack.c.l.b16 %v119
    %v351 = vunpack.c.l.b16 %v120
    %v352 = vunpack.c.l.b16 %v121
    %v353 = vunpack.c.l.b16 %v122
    %v354 = vunpack.c.l.b16 %v123
    %v355 = vunpack.c.l.b16 %v124
    %v356 = vunpack.c.l.b16 %v125
    %v357 = vunpack.c.l.b16 %v126
    %v358 = vunpack.c.l.b16 %v127
    %v359 = vunpack.c.l.b16 %v128
    %v360 = vunpack.c.l.b16 %v129
    %v361 = vunpack.c.l.b16 %v130
    %v362 = vunpack.c.l.b16 %v131
    %v363 = vunpack.c.l.b16 %v132
    %v364 = vunpack.c.l.b16 %v133
    %v365 = vunpack.c.l.b16 %v134
    %v366 = vunpack.c.l.b16 %v135
    %v367 = vunpack.c.l.b16 %v136
    %v368 = vunpack.c.l.b16 %v137
    %v369 = vunpack.c.l.b16 %v138
    %v370 = vunpack.c.l.b16 %v139
    %v371 = vunpack.c.l.b16 %v140
    %v372 = vunpack.c.l.b16 %v141
    %v373 = vunpack.c.l.b16 %v142
    %v374 = vunpack.c.l.b16 %v143
    %v375 = vunpack.c.l.b16 %v144
    %v376 = vunpack.c.l.b16 %v145
    %v377 = vunpack.c.l.b16 %v146
    %v378 = vunpack.c.l.b16 %v147
    %v379 = vunpack.c.l.b16 %v148
    %v380 = vunpack.c.l.b16 %v149
    %v381 = vunpack.c.l.b16 %v150
    %v382 = vunpack.c.l.b16 %v151
    %v383 = vunpack.c.l.b16 %v152
    %v384 = vunpack.c.l.b16 %v153
    %v385 = vunpack.c.l.b16 %v154
    %v386 = vunpack.c.l.b16 %v155
    %v387 = vunpack.c.l.b16 %v156
    %v388 = vunpack.c.l.b16 %v157
    %v389 = vunpack.c.l.b16 %v158
    %v390 = vunpack.c.l.b16 %v159
    %v391 = vunpack.c.l.b16 %v160
    %v392 = vunpack.c.l.b16 %v161
    %v393 = vunpack.c.l.b16 %v162
    %v394 = vunpack.c.l.b16 %v163
    %v395 = vunpack.c.l.b16 %v164
    %v396 = vunpack.c.l.b16 %v165
    %v397 = vunpack.c.l.b16 %v166
    %v398 = vunpack.c.l.b16 %v167
    %v399 = vunpack.c.l.b16 %v168
    %v400 = vunpack.c.l.b16 %v169
    %v401 = vunpack.c.l.b16 %v170
    %v402 = vunpack.c.l.b16 %v171
    %v403 = vunpack.c.l.b16 %v172
    %v404 = vunpack.c.l.b16 %v173
    %v405 = vunpack.c.l.b16 %v174
    %v406 = vunpack.c.l.b16 %v175
    %v407 = vunpack.c.l.b16 %v176
    %v408 = vunpack.c.l.b16 %v177
    %v409 = vunpack.c.l.b16 %v178
    %v410 = vunpack.c.l.b16 %v179
    %v411 = vunpack.c.l.b16 %v180
    %v412 = vunpack.c.l.b16 %v181
    %v413 = vunpack.c.l.b16 %v182
    %v414 = vunpack.c.l.b16 %v183
    %v415 = vpack.c.b16 %v304, %v303
    %v416 = vpack.c.b16 %v306, %v305
    %v417 = vpack.c.b16 %v308, %v307
    %v418 = vpack.c.b16 %v310, %v309
    %v419 = vpack.c.b16 %v312, %v311
    %v420 = vpack.c.b16 %v314, %v313
    %v421 = vpack.c.b16 %v316, %v315
    %v422 = vpack.c.b16 %v318, %v317
    %v423 = vpack.c.b16 %v320, %v319
    %v424 = vpack.c.b16 %v322, %v321
    %v425 = vpack.c.b16 %v324, %v323
    %v426 = vpack.c.b16 %v326, %v325
    %v427 = vpack.c.b16 %v328, %v327
    %v428 = vpack.c.b16 %v330, %v329
    %v429 = vpack.c.b16 %v332, %v331
    %v430 = vpack.c.b16 %v334, %v333
    %v431 = vpack.c.b16 %v336, %v335
    %v432 = vpack.c.b16 %v338, %v337
    %v433 = vpack.c.b16 %v340, %v339
    %v434 = vpack.c.b16 %v342, %v341
    %v435 = vpack.c.b16 %v344, %v343
    %v436 = vpack.c.b16 %v346, %v345
    %v437 = vpack.c.b16 %v348, %v347
    %v438 = vpack.c.b16 %v350, %v349
    %v439 = vpack.c.b16 %v352, %v351
    %v440 = vpack.c.b16 %v354, %v353
    %v441 = vpack.c.b16 %v356, %v355
    %v442 = vpack.c.b16 %v358, %v357
    %v443 = vpack.c.b16 %v360, %v359
    %v444 = vpack.c.b16 %v362, %v361
    %v445 = vpack.c.b16 %v364, %v363
    %v446 = vpack.c.b16 %v366, %v365
    %v447 = vpack.c.b16 %v368, %v367
    %v448 = vpack.c.b16 %v370, %v369
    %v449 = vpack.c.b16 %v372, %v371
    %v450 = vpack.c.b16 %v374, %v373
    %v451 = vpack.c.b16 %v376, %v375
    %v452 = vpack.c.b16 %v378, %v377
    %v453 = vpack.c.b16 %v380, %v379
    %v454 = vpack.c.b16 %v382, %v381
    %v455 = vpack.c.b16 %v384, %v383
    %v456 = vpack.c.b16 %v386, %v385
    %v457 = vpack.c.b16 %v388, %v387
    %v458 = vpack.c.b16 %v390, %v389
    %v459 = vpack.c.b16 %v392, %v391
    %v460 = vpack.c.b16 %v394, %v393
    %v461 = vpack.c.b16 %v396, %v395
    %v462 = vpack.c.b16 %v398, %v397
    %v463 = vpack.c.b16 %v400, %v399
    %v464 = vpack.c.b16 %v402, %v401
    %v465 = vpack.c.b16 %v404, %v403
    %v466 = vpack.c.b16 %v406, %v405
    %v467 = vpack.c.b16 %v408, %v407
    %v468 = vpack.c.b16 %v410, %v409
    %v469 = vpack.c.b16 %v412, %v411
    %v470 = vpack.c.b16 %v414, %v413
    %527 = vmatprep.subr.bf16.mxu0 0
    %528 = vmatpush1.bf16.msra.mxu0 %v415
    %529 = vmatprep.subr.bf16.mxu0 0
    %530 = vmatpush1.bf16.msra.mxu0 %v416
    %531 = vmatprep.subr.bf16.mxu0 0
    %532 = vmatpush1.bf16.msra.mxu0 %v417
    %533 = vmatprep.subr.bf16.mxu0 0
    %534 = vmatpush1.bf16.msra.mxu0 %v418
    %535 = vmatprep.subr.bf16.mxu0 0
    %536 = vmatpush1.bf16.msra.mxu0 %v419
    %537 = vmatprep.subr.bf16.mxu0 0
    %538 = vmatpush1.bf16.msra.mxu0 %v420
    %539 = vmatprep.subr.bf16.mxu0 0
    %540 = vmatpush1.bf16.msra.mxu0 %v421
    %541 = vmatprep.subr.bf16.mxu0 0
    %542 = vmatpush1.bf16.msra.mxu0 %v422
    %543 = vmatprep.subr.bf16.mxu0 0
    %544 = vmatpush1.bf16.msra.mxu0 %v423
    %545 = vmatprep.subr.bf16.mxu0 0
    %546 = vmatpush1.bf16.msra.mxu0 %v424
    %547 = vmatprep.subr.bf16.mxu0 0
    %548 = vmatpush1.bf16.msra.mxu0 %v425
    %549 = vmatprep.subr.bf16.mxu0 0
    %550 = vmatpush1.bf16.msra.mxu0 %v426
    %551 = vmatprep.subr.bf16.mxu0 0
    %552 = vmatpush1.bf16.msra.mxu0 %v427
    %553 = vmatprep.subr.bf16.mxu0 0
    %554 = vmatpush1.bf16.msra.mxu0 %v428
    %555 = vmatprep.subr.bf16.mxu0 0
    %556 = vmatpush1.bf16.msra.mxu0 %v429
    %557 = vmatprep.subr.bf16.mxu0 0
    %558 = vmatpush1.bf16.msra.mxu0 %v430
    %559 = vmatprep.mubr.bf16.mxu0 %v66
    %560 = vmatmul.mubr.bf16.gmra.mrb[0].mxu0 %v65
    %v561 = vpop.f32.mrb[0].mxu0
    %v562 = vadd.f32 %v189, %v561
    %v563 = vpop.f32.mrb[0].mxu0
    %v564 = vpop.f32.mrb[0].mxu0
    %v565 = vpop.f32.mrb[0].mxu0
    %566 = vdwg.mxu0
    %567 = vmatprep.subr.bf16.mxu0 0
    %568 = vmatpush1.bf16.msra.mxu0 %v431
    %569 = vmatprep.subr.bf16.mxu0 0
    %570 = vmatpush1.bf16.msra.mxu0 %v432
    %571 = vmatprep.subr.bf16.mxu0 0
    %572 = vmatpush1.bf16.msra.mxu0 %v433
    %573 = vmatprep.subr.bf16.mxu0 0
    %574 = vmatpush1.bf16.msra.mxu0 %v434
    %575 = vmatprep.subr.bf16.mxu0 0
    %576 = vmatpush1.bf16.msra.mxu0 %v435
    %577 = vmatprep.subr.bf16.mxu0 0
    %578 = vmatpush1.bf16.msra.mxu0 %v436
    %579 = vmatprep.subr.bf16.mxu0 0
    %580 = vmatpush1.bf16.msra.mxu0 %v437
    %581 = vmatprep.subr.bf16.mxu0 0
    %582 = vmatpush1.bf16.msra.mxu0 %v438
    %583 = vmatprep.subr.bf16.mxu0 0
    %584 = vmatpush1.bf16.msra.mxu0 %v439
    %585 = vmatprep.subr.bf16.mxu0 0
    %586 = vmatpush1.bf16.msra.mxu0 %v440
    %587 = vmatprep.subr.bf16.mxu0 0
    %588 = vmatpush1.bf16.msra.mxu0 %v441
    %589 = vmatprep.subr.bf16.mxu0 0
    %590 = vmatpush1.bf16.msra.mxu0 %v442
    %591 = vmatprep.subr.bf16.mxu0 0
    %592 = vmatpush1.bf16.msra.mxu0 %v443
    %593 = vmatprep.subr.bf16.mxu0 0
    %594 = vmatpush1.bf16.msra.mxu0 %v444
    %595 = vmatprep.subr.bf16.mxu0 0
    %596 = vmatpush1.bf16.msra.mxu0 %v445
    %597 = vmatprep.subr.bf16.mxu0 0
    %598 = vmatpush1.bf16.msra.mxu0 %v446
    %599 = vmatprep.mubr.bf16.mxu0 %v68
    %600 = vmatmul.mubr.bf16.gmra.mrb[0].mxu0 %v67
    %v601 = vpop.f32.mrb[0].mxu0
    %v602 = vadd.f32 %v562, %v601
    %v603 = vpop.f32.mrb[0].mxu0
    %v604 = vpop.f32.mrb[0].mxu0
    %v605 = vpop.f32.mrb[0].mxu0
    %606 = vdwg.mxu0
    %607 = vmatprep.subr.bf16.mxu0 0
    %608 = vmatpush1.bf16.msra.mxu0 %v447
    %609 = vmatprep.subr.bf16.mxu0 0
    %610 = vmatpush1.bf16.msra.mxu0 %v448
    %611 = vmatprep.subr.bf16.mxu0 0
    %612 = vmatpush1.bf16.msra.mxu0 %v449
    %613 = vmatprep.subr.bf16.mxu0 0
    %614 = vmatpush1.bf16.msra.mxu0 %v450
    %615 = vmatprep.subr.bf16.mxu0 0
    %616 = vmatpush1.bf16.msra.mxu0 %v451
    %617 = vmatprep.subr.bf16.mxu0 0
    %618 = vmatpush1.bf16.msra.mxu0 %v452
    %619 = vmatprep.subr.bf16.mxu0 0
    %620 = vmatpush1.bf16.msra.mxu0 %v453
    %621 = vmatprep.subr.bf16.mxu0 0
    %622 = vmatpush1.bf16.msra.mxu0 %v454
    %623 = vmatprep.subr.bf16.mxu0 0
    %624 = vmatpush1.bf16.msra.mxu0 %v455
    %625 = vmatprep.subr.bf16.mxu0 0
    %626 = vmatpush1.bf16.msra.mxu0 %v456
    %627 = vmatprep.subr.bf16.mxu0 0
    %628 = vmatpush1.bf16.msra.mxu0 %v457
    %629 = vmatprep.subr.bf16.mxu0 0
    %630 = vmatpush1.bf16.msra.mxu0 %v458
    %631 = vmatprep.subr.bf16.mxu0 0
    %632 = vmatpush1.bf16.msra.mxu0 %v459
    %633 = vmatprep.subr.bf16.mxu0 0
    %634 = vmatpush1.bf16.msra.mxu0 %v460
    %635 = vmatprep.subr.bf16.mxu0 0
    %636 = vmatpush1.bf16.msra.mxu0 %v461
    %637 = vmatprep.subr.bf16.mxu0 0
    %638 = vmatpush1.bf16.msra.mxu0 %v462
    %639 = vmatprep.mubr.bf16.mxu0 %v70
    %640 = vmatmul.mubr.bf16.gmra.mrb[0].mxu0 %v69
    %v641 = vpop.f32.mrb[0].mxu0
    %v642 = vadd.f32 %v602, %v641
    %v643 = vpop.f32.mrb[0].mxu0
    %v644 = vpop.f32.mrb[0].mxu0
    %v645 = vpop.f32.mrb[0].mxu0
    %646 = vdwg.mxu0
    %647 = vmatprep.subr.bf16.mxu0 0
    %648 = vmatpush1.bf16.msra.mxu0 %v463
    %649 = vmatprep.subr.bf16.mxu0 0
    %650 = vmatpush1.bf16.msra.mxu0 %v464
    %651 = vmatprep.subr.bf16.mxu0 0
    %652 = vmatpush1.bf16.msra.mxu0 %v465
    %653 = vmatprep.subr.bf16.mxu0 0
    %654 = vmatpush1.bf16.msra.mxu0 %v466
    %655 = vmatprep.subr.bf16.mxu0 0
    %656 = vmatpush1.bf16.msra.mxu0 %v467
    %657 = vmatprep.subr.bf16.mxu0 0
    %658 = vmatpush1.bf16.msra.mxu0 %v468
    %659 = vmatprep.subr.bf16.mxu0 0
    %660 = vmatpush1.bf16.msra.mxu0 %v469
    %661 = vmatprep.subr.bf16.mxu0 0
    %662 = vmatpush1.bf16.msra.mxu0 %v470
    %663 = vmatprep.subr.bf16.mxu0 0
    %664 = vmatpush1.bf16.msra.mxu0 0
    %665 = vmatprep.subr.bf16.mxu0 0
    %666 = vmatpush1.bf16.msra.mxu0 0
    %667 = vmatprep.subr.bf16.mxu0 0
    %668 = vmatpush1.bf16.msra.mxu0 0
    %669 = vmatprep.subr.bf16.mxu0 0
    %670 = vmatpush1.bf16.msra.mxu0 0
    %671 = vmatprep.subr.bf16.mxu0 0
    %672 = vmatpush1.bf16.msra.mxu0 0
    %673 = vmatprep.subr.bf16.mxu0 0
    %674 = vmatpush1.bf16.msra.mxu0 0
    %675 = vmatprep.subr.bf16.mxu0 0
    %676 = vmatpush1.bf16.msra.mxu0 0
    %677 = vmatprep.subr.bf16.mxu0 0
    %678 = vmatpush1.bf16.msra.mxu0 0
    %679 = vmatprep.mubr.bf16.mxu0 0
    %680 = vmatmul.mubr.bf16.gmra.mrb[0].mxu0 %v71
    %v681 = vpop.f32.mrb[0].mxu0
    %v682 = vadd.f32 %v642, %v681
    %v683 = vpop.f32.mrb[0].mxu0
    %v684 = vpop.f32.mrb[0].mxu0
    %v685 = vpop.f32.mrb[0].mxu0
    %686 = vdwg.mxu0
    %v687 = vtanh.pop %v682
    %v688 = vpack.c.bf16 %v687, %v687
    %v689 = vld [vmem:[%s5] sm:$0xf]
    %v690 = vld [vmem:[%s5 + $0x4] sm:$0xf]
    %v691 = vld [vmem:[%s5 + $0x8] sm:$0xf]
    %v692 = vld [vmem:[%s5 + $0xc] sm:$0xf]
    %v693 = vld [vmem:[%s6] sm:$0x1]
    %v695 = vlaneseq
    %v696 = vshrl.u32 %v695, 7
    %v697 = vsub.s32 0, %v696
    %v698 = vrot.slane %v693, %v697
    %v704 = vunpack.c.l.b16 %v689
    %v705 = vunpack.c.l.b16 %v690
    %v706 = vunpack.c.l.b16 %v691
    %v707 = vunpack.c.l.b16 %v692
    %v708 = vpack.c.b16 %v705, %v704
    %v709 = vpack.c.b16 %v707, %v706
    %vm712 = vcmask 261120
    %v714 = vsel %vm712, %v688, 0
    %716 = vmatprep.subr.bf16.mxu0 0
    %717 = vmatpush1.bf16.msra.mxu0 %v708
    %718 = vmatprep.subr.bf16.mxu0 0
    %719 = vmatpush1.bf16.msra.mxu0 %v709
    %720 = vmatprep.subr.bf16.mxu0 0
    %721 = vmatpush1.bf16.msra.mxu0 0
    %722 = vmatprep.subr.bf16.mxu0 0
    %723 = vmatpush1.bf16.msra.mxu0 0
    %724 = vmatprep.subr.bf16.mxu0 0
    %725 = vmatpush1.bf16.msra.mxu0 0
    %726 = vmatprep.subr.bf16.mxu0 0
    %727 = vmatpush1.bf16.msra.mxu0 0
    %728 = vmatprep.subr.bf16.mxu0 0
    %729 = vmatpush1.bf16.msra.mxu0 0
    %730 = vmatprep.subr.bf16.mxu0 0
    %731 = vmatpush1.bf16.msra.mxu0 0
    %732 = vmatprep.subr.bf16.mxu0 0
    %733 = vmatpush1.bf16.msra.mxu0 0
    %734 = vmatprep.subr.bf16.mxu0 0
    %735 = vmatpush1.bf16.msra.mxu0 0
    %736 = vmatprep.subr.bf16.mxu0 0
    %737 = vmatpush1.bf16.msra.mxu0 0
    %738 = vmatprep.subr.bf16.mxu0 0
    %739 = vmatpush1.bf16.msra.mxu0 0
    %740 = vmatprep.subr.bf16.mxu0 0
    %741 = vmatpush1.bf16.msra.mxu0 0
    %742 = vmatprep.subr.bf16.mxu0 0
    %743 = vmatpush1.bf16.msra.mxu0 0
    %744 = vmatprep.subr.bf16.mxu0 0
    %745 = vmatpush1.bf16.msra.mxu0 0
    %746 = vmatprep.subr.bf16.mxu0 0
    %747 = vmatpush1.bf16.msra.mxu0 0
    %748 = vmatprep.mubr.bf16.mxu0 0
    %749 = vmatmul.mubr.bf16.gmra.mrb[0].mxu0 %v714
    %v750 = vpop.f32.mrb[0].mxu0
    %v751 = vadd.f32 %v698, %v750
    %v752 = vpop.f32.mrb[0].mxu0
    %v753 = vpop.f32.mrb[0].mxu0
    %v754 = vpop.f32.mrb[0].mxu0
    %755 = vdwg.mxu0
    %v756 = vmax.f32 %v751, 0.0
    %vm757 = vcmp.ne.f32.partialorder %v751, %v751
    %v758 = vadd.f32 %v751, 0.0
    %v759 = vand.u32 2147483647, %v751
    %v760 = vsub.f32 0.0, %v759
    %v761 = vmul.f32 %v760, 1.442695
    %v762 = vpow.pop %v761
    %v763 = vadd.f32 %v762, 1.0
    %v764 = vlog2.pop %v763
    %v765 = vmul.f32 %v764, 0.6931472
    %v766 = vmul.f32 -0.5, %v762
    %v767 = vadd.f32 %v766, 1.0
    %v768 = vmul.f32 %v767, %v762
    %v769 = vand.u32 2147483647, %v762
    %vm770 = vcmp.lt.f32.partialorder %v769, 0.0004427343
    %v771 = vsel %vm770, %v768, %v765
    %v772 = vadd.f32 %v756, %v771
    %v773 = vsel %vm757, %v758, %v772
    %v774 = vadd.f32 %v773, 0.0001
    %v775 = vld [vmem:[%s1] sm:$0xff]
    %777 = vrot.lane.b32.xlu0 %v774, 120
    %v778 = vpop.permute.xlu0 %777
    %v780 = vmul.f32 %v775, %v778
    %v781 = vadd.f32 %v751, %v780
    %v782 = vpack.c.bf16 %v781, %v781
    %v783 = vld [vmem:[%s7] sm:$0xf]
    %v784 = vld [vmem:[%s8] sm:$0x1]
    %v786 = vlaneseq
    %v787 = vshrl.u32 %v786, 7
    %v788 = vsub.s32 0, %v787
    %v789 = vrot.slane %v784, %v788
    %vm791 = vcmask 64512
    %v793 = vsel %vm791, %v782, 0
    %vm795 = vcmask 1043456
    %v797 = vsel %vm795, %v783, 0
    %799 = vmatprep.subr.bf16.mxu0 0
    %800 = vmatpush1.bf16.msra.mxu0 %v797
    %801 = vmatprep.subr.bf16.mxu0 0
    %802 = vmatpush1.bf16.msra.mxu0 0
    %803 = vmatprep.subr.bf16.mxu0 0
    %804 = vmatpush1.bf16.msra.mxu0 0
    %805 = vmatprep.subr.bf16.mxu0 0
    %806 = vmatpush1.bf16.msra.mxu0 0
    %807 = vmatprep.subr.bf16.mxu0 0
    %808 = vmatpush1.bf16.msra.mxu0 0
    %809 = vmatprep.subr.bf16.mxu0 0
    %810 = vmatpush1.bf16.msra.mxu0 0
    %811 = vmatprep.subr.bf16.mxu0 0
    %812 = vmatpush1.bf16.msra.mxu0 0
    %813 = vmatprep.subr.bf16.mxu0 0
    %814 = vmatpush1.bf16.msra.mxu0 0
    %815 = vmatprep.subr.bf16.mxu0 0
    %816 = vmatpush1.bf16.msra.mxu0 0
    %817 = vmatprep.subr.bf16.mxu0 0
    %818 = vmatpush1.bf16.msra.mxu0 0
    %819 = vmatprep.subr.bf16.mxu0 0
    %820 = vmatpush1.bf16.msra.mxu0 0
    %821 = vmatprep.subr.bf16.mxu0 0
    %822 = vmatpush1.bf16.msra.mxu0 0
    %823 = vmatprep.subr.bf16.mxu0 0
    %824 = vmatpush1.bf16.msra.mxu0 0
    %825 = vmatprep.subr.bf16.mxu0 0
    %826 = vmatpush1.bf16.msra.mxu0 0
    %827 = vmatprep.subr.bf16.mxu0 0
    %828 = vmatpush1.bf16.msra.mxu0 0
    %829 = vmatprep.subr.bf16.mxu0 0
    %830 = vmatpush1.bf16.msra.mxu0 0
    %831 = vmatprep.mubr.bf16.mxu0 0
    %832 = vmatmul.mubr.bf16.gmra.mrb[0].mxu0 %v793
    %v833 = vpop.f32.mrb[0].mxu0
    %v834 = vadd.f32 %v789, %v833
    %v835 = vpop.f32.mrb[0].mxu0
    %v836 = vpop.f32.mrb[0].mxu0
    %v837 = vpop.f32.mrb[0].mxu0
    %838 = vdwg.mxu0
    %v839 = vtanh.pop %v834
    %v840 = vpack.c.bf16 %v839, %v839
    %v841 = vld [vmem:[%s9] sm:$0xf]
    %v842 = vld [vmem:[%s9 + $0x4] sm:$0xf]
    %v843 = vld [vmem:[%s9 + $0x8] sm:$0xf]
    %v844 = vld [vmem:[%s9 + $0xc] sm:$0xf]
    %v845 = vld [vmem:[%s10] sm:$0x1]
    %v847 = vlaneseq
    %v848 = vshrl.u32 %v847, 7
    %v849 = vsub.s32 0, %v848
    %v850 = vrot.slane %v845, %v849
    %v856 = vunpack.c.l.b16 %v841
    %v857 = vunpack.c.l.b16 %v842
    %v858 = vunpack.c.l.b16 %v843
    %v859 = vunpack.c.l.b16 %v844
    %v860 = vpack.c.b16 %v857, %v856
    %v861 = vpack.c.b16 %v859, %v858
    %v865 = vsel %vm712, %v840, 0
    %867 = vmatprep.subr.bf16.mxu0 0
    %868 = vmatpush1.bf16.msra.mxu0 %v860
    %869 = vmatprep.subr.bf16.mxu0 0
    %870 = vmatpush1.bf16.msra.mxu0 %v861
    %871 = vmatprep.subr.bf16.mxu0 0
    %872 = vmatpush1.bf16.msra.mxu0 0
    %873 = vmatprep.subr.bf16.mxu0 0
    %874 = vmatpush1.bf16.msra.mxu0 0
    %875 = vmatprep.subr.bf16.mxu0 0
    %876 = vmatpush1.bf16.msra.mxu0 0
    %877 = vmatprep.subr.bf16.mxu0 0
    %878 = vmatpush1.bf16.msra.mxu0 0
    %879 = vmatprep.subr.bf16.mxu0 0
    %880 = vmatpush1.bf16.msra.mxu0 0
    %881 = vmatprep.subr.bf16.mxu0 0
    %882 = vmatpush1.bf16.msra.mxu0 0
    %883 = vmatprep.subr.bf16.mxu0 0
    %884 = vmatpush1.bf16.msra.mxu0 0
    %885 = vmatprep.subr.bf16.mxu0 0
    %886 = vmatpush1.bf16.msra.mxu0 0
    %887 = vmatprep.subr.bf16.mxu0 0
    %888 = vmatpush1.bf16.msra.mxu0 0
    %889 = vmatprep.subr.bf16.mxu0 0
    %890 = vmatpush1.bf16.msra.mxu0 0
    %891 = vmatprep.subr.bf16.mxu0 0
    %892 = vmatpush1.bf16.msra.mxu0 0
    %893 = vmatprep.subr.bf16.mxu0 0
    %894 = vmatpush1.bf16.msra.mxu0 0
    %895 = vmatprep.subr.bf16.mxu0 0
    %896 = vmatpush1.bf16.msra.mxu0 0
    %897 = vmatprep.subr.bf16.mxu0 0
    %898 = vmatpush1.bf16.msra.mxu0 0
    %899 = vmatprep.mubr.bf16.mxu0 0
    %900 = vmatmul.mubr.bf16.gmra.mrb[0].mxu0 %v865
    %v901 = vpop.f32.mrb[0].mxu0
    %v902 = vadd.f32 %v850, %v901
    %v903 = vpop.f32.mrb[0].mxu0
    %v904 = vpop.f32.mrb[0].mxu0
    %v905 = vpop.f32.mrb[0].mxu0
    %906 = vdwg.mxu0
    %v907 = vmax.f32 %v902, 0.0
    %vm908 = vcmp.ne.f32.partialorder %v902, %v902
    %v909 = vadd.f32 %v902, 0.0
    %v910 = vand.u32 2147483647, %v902
    %v911 = vsub.f32 0.0, %v910
    %v912 = vmul.f32 %v911, 1.442695
    %v913 = vpow.pop %v912
    %v914 = vadd.f32 %v913, 1.0
    %v915 = vlog2.pop %v914
    %v916 = vmul.f32 %v915, 0.6931472
    %v917 = vmul.f32 -0.5, %v913
    %v918 = vadd.f32 %v917, 1.0
    %v919 = vmul.f32 %v918, %v913
    %v920 = vand.u32 2147483647, %v913
    %vm921 = vcmp.lt.f32.partialorder %v920, 0.0004427343
    %v922 = vsel %vm921, %v919, %v916
    %v923 = vadd.f32 %v907, %v922
    %v924 = vsel %vm908, %v909, %v923
    %v925 = vadd.f32 %v924, 0.0001
    %v926 = vld [vmem:[%s11] sm:$0xf]
    %v927 = vld [vmem:[%s11 + $0x4] sm:$0xf]
    %v928 = vld [vmem:[%s11 + $0x8] sm:$0xf]
    %v929 = vld [vmem:[%s11 + $0xc] sm:$0xf]
    %v930 = vld [vmem:[%s12] sm:$0x1]
    %v932 = vlaneseq
    %v933 = vshrl.u32 %v932, 7
    %v934 = vsub.s32 0, %v933
    %v935 = vrot.slane %v930, %v934
    %v941 = vunpack.c.l.b16 %v926
    %v942 = vunpack.c.l.b16 %v927
    %v943 = vunpack.c.l.b16 %v928
    %v944 = vunpack.c.l.b16 %v929
    %v945 = vpack.c.b16 %v942, %v941
    %v946 = vpack.c.b16 %v944, %v943
    %949 = vmatprep.subr.bf16.mxu0 0
    %950 = vmatpush1.bf16.msra.mxu0 %v945
    %951 = vmatprep.subr.bf16.mxu0 0
    %952 = vmatpush1.bf16.msra.mxu0 %v946
    %953 = vmatprep.subr.bf16.mxu0 0
    %954 = vmatpush1.bf16.msra.mxu0 0
    %955 = vmatprep.subr.bf16.mxu0 0
    %956 = vmatpush1.bf16.msra.mxu0 0
    %957 = vmatprep.subr.bf16.mxu0 0
    %958 = vmatpush1.bf16.msra.mxu0 0
    %959 = vmatprep.subr.bf16.mxu0 0
    %960 = vmatpush1.bf16.msra.mxu0 0
    %961 = vmatprep.subr.bf16.mxu0 0
    %962 = vmatpush1.bf16.msra.mxu0 0
    %963 = vmatprep.subr.bf16.mxu0 0
    %964 = vmatpush1.bf16.msra.mxu0 0
    %965 = vmatprep.subr.bf16.mxu0 0
    %966 = vmatpush1.bf16.msra.mxu0 0
    %967 = vmatprep.subr.bf16.mxu0 0
    %968 = vmatpush1.bf16.msra.mxu0 0
    %969 = vmatprep.subr.bf16.mxu0 0
    %970 = vmatpush1.bf16.msra.mxu0 0
    %971 = vmatprep.subr.bf16.mxu0 0
    %972 = vmatpush1.bf16.msra.mxu0 0
    %973 = vmatprep.subr.bf16.mxu0 0
    %974 = vmatpush1.bf16.msra.mxu0 0
    %975 = vmatprep.subr.bf16.mxu0 0
    %976 = vmatpush1.bf16.msra.mxu0 0
    %977 = vmatprep.subr.bf16.mxu0 0
    %978 = vmatpush1.bf16.msra.mxu0 0
    %979 = vmatprep.subr.bf16.mxu0 0
    %980 = vmatpush1.bf16.msra.mxu0 0
    %981 = vmatprep.mubr.bf16.mxu0 0
    %982 = vmatmul.mubr.bf16.gmra.mrb[0].mxu0 %v714
    %v983 = vpop.f32.mrb[0].mxu0
    %v984 = vadd.f32 %v935, %v983
    %v985 = vpop.f32.mrb[0].mxu0
    %v986 = vpop.f32.mrb[0].mxu0
    %v987 = vpop.f32.mrb[0].mxu0
    %988 = vdwg.mxu0
    %v989 = vmax.f32 %v984, 0.0
    %vm990 = vcmp.ne.f32.partialorder %v984, %v984
    %v991 = vadd.f32 %v984, 0.0
    %v992 = vand.u32 2147483647, %v984
    %v993 = vsub.f32 0.0, %v992
    %v994 = vmul.f32 %v993, 1.442695
    %v995 = vpow.pop %v994
    %v996 = vadd.f32 %v995, 1.0
    %v997 = vlog2.pop %v996
    %v998 = vmul.f32 %v997, 0.6931472
    %v999 = vmul.f32 -0.5, %v995
    %v1000 = vadd.f32 %v999, 1.0
    %v1001 = vmul.f32 %v1000, %v995
    %v1002 = vand.u32 2147483647, %v995
    %vm1003 = vcmp.lt.f32.partialorder %v1002, 0.0004427343
    %v1004 = vsel %vm1003, %v1001, %v998
    %v1005 = vadd.f32 %v989, %v1004
    %v1006 = vsel %vm990, %v991, %v1005
    %v1007 = vadd.f32 %v1006, 0.0001
    %v1008 = vmul.f32 %v925, %v925
    %v1009 = vrcp.pop %v1008
    %v1010 = vmul.f32 %v1007, %v1007
    %v1011 = vrcp.pop %v1010
    %v1012 = vadd.f32 %v1009, %v1011
    %v1013 = vrsqrt.pop %v1012
    %1015 = vrot.lane.b32.xlu0 %v1009, 112
    %v1016 = vpop.permute.xlu0 %1015
    %v1018 = vmul.f32 %v902, %v1016
    %1020 = vrot.lane.b32.xlu0 %v1011, 112
    %v1021 = vpop.permute.xlu0 %1020
    %v1023 = vmul.f32 %v984, %v1021
    %v1024 = vadd.f32 %v1018, %v1023
    %v1025 = vrcp.pop %v1012
    %1027 = vrot.lane.b32.xlu0 %v1025, 112
    %v1028 = vpop.permute.xlu0 %1027
    %v1030 = vmul.f32 %v1024, %v1028
    %v1031 = vld [vmem:[%s2] sm:$0xff]
    %1033 = vrot.lane.b32.xlu0 %v1013, 112
    %v1034 = vpop.permute.xlu0 %1033
    %v1036 = vmul.f32 %v1031, %v1034
    %v1037 = vadd.f32 %v1030, %v1036
    %v1038 = vpack.c.bf16 %v1037, %v1037
    %v1039 = vld [vmem:[%s13] sm:$0xf]
    %v1040 = vld [vmem:[%s13 + $0x4] sm:$0xf]
    %v1041 = vld [vmem:[%s14] sm:$0x1]
    %v1043 = vlaneseq
    %v1044 = vshrl.u32 %v1043, 7
    %v1045 = vsub.s32 0, %v1044
    %v1046 = vrot.slane %v1041, %v1045
    %v1050 = vunpack.c.l.b16 %v1039
    %v1051 = vunpack.c.l.b16 %v1040
    %v1052 = vpack.c.b16 %v1051, %v1050
    %vm1054 = vcmask 130048
    %v1056 = vsel %vm1054, %v1038, 0
    %1058 = vmatprep.subr.bf16.mxu0 0
    %1059 = vmatpush1.bf16.msra.mxu0 %v1052
    %1060 = vmatprep.subr.bf16.mxu0 0
    %1061 = vmatpush1.bf16.msra.mxu0 0
    %1062 = vmatprep.subr.bf16.mxu0 0
    %1063 = vmatpush1.bf16.msra.mxu0 0
    %1064 = vmatprep.subr.bf16.mxu0 0
    %1065 = vmatpush1.bf16.msra.mxu0 0
    %1066 = vmatprep.subr.bf16.mxu0 0
    %1067 = vmatpush1.bf16.msra.mxu0 0
    %1068 = vmatprep.subr.bf16.mxu0 0
    %1069 = vmatpush1.bf16.msra.mxu0 0
    %1070 = vmatprep.subr.bf16.mxu0 0
    %1071 = vmatpush1.bf16.msra.mxu0 0
    %1072 = vmatprep.subr.bf16.mxu0 0
    %1073 = vmatpush1.bf16.msra.mxu0 0
    %1074 = vmatprep.subr.bf16.mxu0 0
    %1075 = vmatpush1.bf16.msra.mxu0 0
    %1076 = vmatprep.subr.bf16.mxu0 0
    %1077 = vmatpush1.bf16.msra.mxu0 0
    %1078 = vmatprep.subr.bf16.mxu0 0
    %1079 = vmatpush1.bf16.msra.mxu0 0
    %1080 = vmatprep.subr.bf16.mxu0 0
    %1081 = vmatpush1.bf16.msra.mxu0 0
    %1082 = vmatprep.subr.bf16.mxu0 0
    %1083 = vmatpush1.bf16.msra.mxu0 0
    %1084 = vmatprep.subr.bf16.mxu0 0
    %1085 = vmatpush1.bf16.msra.mxu0 0
    %1086 = vmatprep.subr.bf16.mxu0 0
    %1087 = vmatpush1.bf16.msra.mxu0 0
    %1088 = vmatprep.subr.bf16.mxu0 0
    %1089 = vmatpush1.bf16.msra.mxu0 0
    %1090 = vmatprep.mubr.bf16.mxu0 0
    %1091 = vmatmul.mubr.bf16.gmra.mrb[0].mxu0 %v1056
    %v1092 = vpop.f32.mrb[0].mxu0
    %v1093 = vadd.f32 %v1046, %v1092
    %v1094 = vpop.f32.mrb[0].mxu0
    %v1095 = vpop.f32.mrb[0].mxu0
    %v1096 = vpop.f32.mrb[0].mxu0
    %1097 = vdwg.mxu0
    %v1098 = vtanh.pop %v1093
    %v1099 = vpack.c.bf16 %v1098, %v1098
    %v1100 = vld [vmem:[%s15] sm:$0xff]
    %v1101 = vld [vmem:[%s15 + $0x8] sm:$0xff]
    %v1102 = vld [vmem:[%s15 + $0x10] sm:$0xff]
    %v1103 = vld [vmem:[%s15 + $0x18] sm:$0xf]
    %v1104 = vld [vmem:[%s15 + $0x1c] sm:$0xff]
    %v1105 = vld [vmem:[%s15 + $0x24] sm:$0xff]
    %v1106 = vld [vmem:[%s15 + $0x2c] sm:$0xff]
    %v1107 = vld [vmem:[%s15 + $0x34] sm:$0xf]
    %v1108 = vld [vmem:[%s15 + $0x38] sm:$0xff]
    %v1109 = vld [vmem:[%s15 + $0x40] sm:$0xff]
    %v1110 = vld [vmem:[%s15 + $0x48] sm:$0xff]
    %v1111 = vld [vmem:[%s15 + $0x50] sm:$0xf]
    %v1112 = vld [vmem:[%s15 + $0x54] sm:$0xff]
    %v1113 = vld [vmem:[%s15 + $0x5c] sm:$0xff]
    %v1114 = vld [vmem:[%s15 + $0x64] sm:$0xff]
    %v1115 = vld [vmem:[%s15 + $0x6c] sm:$0xf]
    %v1116 = vld [vmem:[%s16] sm:$0xff]
    %v1118 = vlaneseq
    %v1119 = vshrl.u32 %v1118, 7
    %v1120 = vsub.s32 0, %v1119
    %v1121 = vrot.slane %v1116, %v1120
    %v1122 = vlaneseq
    %v1123 = vshrl.u32 %v1122, 7
    %v1124 = vsub.s32 1, %v1123
    %v1125 = vrot.slane %v1116, %v1124
    %v1126 = vlaneseq
    %v1127 = vshrl.u32 %v1126, 7
    %v1128 = vsub.s32 2, %v1127
    %v1129 = vrot.slane %v1116, %v1128
    %v1130 = vlaneseq
    %v1131 = vshrl.u32 %v1130, 7
    %v1132 = vsub.s32 3, %v1131
    %v1133 = vrot.slane %v1116, %v1132
    %v1134 = vlaneseq
    %v1135 = vshrl.u32 %v1134, 7
    %v1136 = vsub.s32 4, %v1135
    %v1137 = vrot.slane %v1116, %v1136
    %v1138 = vlaneseq
    %v1139 = vshrl.u32 %v1138, 7
    %v1140 = vsub.s32 5, %v1139
    %v1141 = vrot.slane %v1116, %v1140
    %v1142 = vlaneseq
    %v1143 = vshrl.u32 %v1142, 7
    %v1144 = vsub.s32 6, %v1143
    %v1145 = vrot.slane %v1116, %v1144
    %v1169 = vunpack.c.l.b16 %v1100
    %v1170 = vunpack.c.h.b16 %v1100
    %v1171 = vunpack.c.l.b16 %v1101
    %v1172 = vunpack.c.h.b16 %v1101
    %v1173 = vunpack.c.l.b16 %v1102
    %v1174 = vunpack.c.h.b16 %v1102
    %v1175 = vunpack.c.l.b16 %v1103
    %v1176 = vunpack.c.l.b16 %v1104
    %v1177 = vunpack.c.h.b16 %v1104
    %v1178 = vunpack.c.l.b16 %v1105
    %v1179 = vunpack.c.h.b16 %v1105
    %v1180 = vunpack.c.l.b16 %v1106
    %v1181 = vunpack.c.h.b16 %v1106
    %v1182 = vunpack.c.l.b16 %v1107
    %v1183 = vunpack.c.l.b16 %v1108
    %v1184 = vunpack.c.h.b16 %v1108
    %v1185 = vunpack.c.l.b16 %v1109
    %v1186 = vunpack.c.h.b16 %v1109
    %v1187 = vunpack.c.l.b16 %v1110
    %v1188 = vunpack.c.h.b16 %v1110
    %v1189 = vunpack.c.l.b16 %v1111
    %v1190 = vunpack.c.l.b16 %v1112
    %v1191 = vunpack.c.h.b16 %v1112
    %v1192 = vunpack.c.l.b16 %v1113
    %v1193 = vunpack.c.h.b16 %v1113
    %v1194 = vunpack.c.l.b16 %v1114
    %v1195 = vunpack.c.h.b16 %v1114
    %v1196 = vunpack.c.l.b16 %v1115
    %v1197 = vpack.c.b16 %v1176, %v1169
    %v1198 = vpack.c.b16 %v1177, %v1170
    %v1199 = vpack.c.b16 %v1178, %v1171
    %v1200 = vpack.c.b16 %v1179, %v1172
    %v1201 = vpack.c.b16 %v1180, %v1173
    %v1202 = vpack.c.b16 %v1181, %v1174
    %v1203 = vpack.c.b16 %v1182, %v1175
    %v1204 = vpack.c.b16 %v1190, %v1183
    %v1205 = vpack.c.b16 %v1191, %v1184
    %v1206 = vpack.c.b16 %v1192, %v1185
    %v1207 = vpack.c.b16 %v1193, %v1186
    %v1208 = vpack.c.b16 %v1194, %v1187
    %v1209 = vpack.c.b16 %v1195, %v1188
    %v1210 = vpack.c.b16 %v1196, %v1189
    %v1226 = vsel %vm712, %v1099, 0
    %1228 = vmatprep.subr.bf16.mxu0 %v1198
    %1229 = vmatpush1.bf16.msra.mxu0 %v1197
    %1230 = vmatprep.subr.bf16.mxu0 %v1205
    %1231 = vmatpush1.bf16.msra.mxu0 %v1204
    %1232 = vmatprep.subr.bf16.mxu0 0
    %1233 = vmatpush1.bf16.msra.mxu0 0
    %1234 = vmatprep.subr.bf16.mxu0 0
    %1235 = vmatpush1.bf16.msra.mxu0 0
    %1236 = vmatprep.subr.bf16.mxu0 0
    %1237 = vmatpush1.bf16.msra.mxu0 0
    %1238 = vmatprep.subr.bf16.mxu0 0
    %1239 = vmatpush1.bf16.msra.mxu0 0
    %1240 = vmatprep.subr.bf16.mxu0 0
    %1241 = vmatpush1.bf16.msra.mxu0 0
    %1242 = vmatprep.subr.bf16.mxu0 0
    %1243 = vmatpush1.bf16.msra.mxu0 0
    %1244 = vmatprep.subr.bf16.mxu0 0
    %1245 = vmatpush1.bf16.msra.mxu0 0
    %1246 = vmatprep.subr.bf16.mxu0 0
    %1247 = vmatpush1.bf16.msra.mxu0 0
    %1248 = vmatprep.subr.bf16.mxu0 0
    %1249 = vmatpush1.bf16.msra.mxu0 0
    %1250 = vmatprep.subr.bf16.mxu0 0
    %1251 = vmatpush1.bf16.msra.mxu0 0
    %1252 = vmatprep.subr.bf16.mxu0 0
    %1253 = vmatpush1.bf16.msra.mxu0 0
    %1254 = vmatprep.subr.bf16.mxu0 0
    %1255 = vmatpush1.bf16.msra.mxu0 0
    %1256 = vmatprep.subr.bf16.mxu0 0
    %1257 = vmatpush1.bf16.msra.mxu0 0
    %1258 = vmatprep.subr.bf16.mxu0 0
    %1259 = vmatpush1.bf16.msra.mxu0 0
    %1260 = vmatprep.mubr.bf16.mxu0 0
    %1261 = vmatmul.mubr.bf16.gmra.mrb[0].mxu0 %v1226
    %v1262 = vpop.f32.mrb[0].mxu0
    %v1263 = vadd.f32 %v1121, %v1262
    %v1264 = vpop.f32.mrb[0].mxu0
    %v1265 = vadd.f32 %v1125, %v1264
    %v1266 = vpop.f32.mrb[0].mxu0
    %v1267 = vpop.f32.mrb[0].mxu0
    %1268 = vdwg.mxu0
    %1269 = vmatprep.subr.bf16.mxu0 %v1200
    %1270 = vmatpush1.bf16.msra.mxu0 %v1199
    %1271 = vmatprep.subr.bf16.mxu0 %v1207
    %1272 = vmatpush1.bf16.msra.mxu0 %v1206
    %1273 = vmatprep.subr.bf16.mxu0 0
    %1274 = vmatpush1.bf16.msra.mxu0 0
    %1275 = vmatprep.subr.bf16.mxu0 0
    %1276 = vmatpush1.bf16.msra.mxu0 0
    %1277 = vmatprep.subr.bf16.mxu0 0
    %1278 = vmatpush1.bf16.msra.mxu0 0
    %1279 = vmatprep.subr.bf16.mxu0 0
    %1280 = vmatpush1.bf16.msra.mxu0 0
    %1281 = vmatprep.subr.bf16.mxu0 0
    %1282 = vmatpush1.bf16.msra.mxu0 0
    %1283 = vmatprep.subr.bf16.mxu0 0
    %1284 = vmatpush1.bf16.msra.mxu0 0
    %1285 = vmatprep.subr.bf16.mxu0 0
    %1286 = vmatpush1.bf16.msra.mxu0 0
    %1287 = vmatprep.subr.bf16.mxu0 0
    %1288 = vmatpush1.bf16.msra.mxu0 0
    %1289 = vmatprep.subr.bf16.mxu0 0
    %1290 = vmatpush1.bf16.msra.mxu0 0
    %1291 = vmatprep.subr.bf16.mxu0 0
    %1292 = vmatpush1.bf16.msra.mxu0 0
    %1293 = vmatprep.subr.bf16.mxu0 0
    %1294 = vmatpush1.bf16.msra.mxu0 0
    %1295 = vmatprep.subr.bf16.mxu0 0
    %1296 = vmatpush1.bf16.msra.mxu0 0
    %1297 = vmatprep.subr.bf16.mxu0 0
    %1298 = vmatpush1.bf16.msra.mxu0 0
    %1299 = vmatprep.subr.bf16.mxu0 0
    %1300 = vmatpush1.bf16.msra.mxu0 0
    %1301 = vmatprep.mubr.bf16.mxu0 0
    %1302 = vmatmul.mubr.bf16.gmra.mrb[0].mxu0 %v1226
    %v1303 = vpop.f32.mrb[0].mxu0
    %v1304 = vadd.f32 %v1129, %v1303
    %v1305 = vpop.f32.mrb[0].mxu0
    %v1306 = vadd.f32 %v1133, %v1305
    %v1307 = vpop.f32.mrb[0].mxu0
    %v1308 = vpop.f32.mrb[0].mxu0
    %1309 = vdwg.mxu0
    %1310 = vmatprep.subr.bf16.mxu0 %v1202
    %1311 = vmatpush1.bf16.msra.mxu0 %v1201
    %1312 = vmatprep.subr.bf16.mxu0 %v1209
    %1313 = vmatpush1.bf16.msra.mxu0 %v1208
    %1314 = vmatprep.subr.bf16.mxu0 0
    %1315 = vmatpush1.bf16.msra.mxu0 0
    %1316 = vmatprep.subr.bf16.mxu0 0
    %1317 = vmatpush1.bf16.msra.mxu0 0
    %1318 = vmatprep.subr.bf16.mxu0 0
    %1319 = vmatpush1.bf16.msra.mxu0 0
    %1320 = vmatprep.subr.bf16.mxu0 0
    %1321 = vmatpush1.bf16.msra.mxu0 0
    %1322 = vmatprep.subr.bf16.mxu0 0
    %1323 = vmatpush1.bf16.msra.mxu0 0
    %1324 = vmatprep.subr.bf16.mxu0 0
    %1325 = vmatpush1.bf16.msra.mxu0 0
    %1326 = vmatprep.subr.bf16.mxu0 0
    %1327 = vmatpush1.bf16.msra.mxu0 0
    %1328 = vmatprep.subr.bf16.mxu0 0
    %1329 = vmatpush1.bf16.msra.mxu0 0
    %1330 = vmatprep.subr.bf16.mxu0 0
    %1331 = vmatpush1.bf16.msra.mxu0 0
    %1332 = vmatprep.subr.bf16.mxu0 0
    %1333 = vmatpush1.bf16.msra.mxu0 0
    %1334 = vmatprep.subr.bf16.mxu0 0
    %1335 = vmatpush1.bf16.msra.mxu0 0
    %1336 = vmatprep.subr.bf16.mxu0 0
    %1337 = vmatpush1.bf16.msra.mxu0 0
    %1338 = vmatprep.subr.bf16.mxu0 0
    %1339 = vmatpush1.bf16.msra.mxu0 0
    %1340 = vmatprep.subr.bf16.mxu0 0
    %1341 = vmatpush1.bf16.msra.mxu0 0
    %1342 = vmatprep.mubr.bf16.mxu0 0
    %1343 = vmatmul.mubr.bf16.gmra.mrb[0].mxu0 %v1226
    %v1344 = vpop.f32.mrb[0].mxu0
    %v1345 = vadd.f32 %v1137, %v1344
    %v1346 = vpop.f32.mrb[0].mxu0
    %v1347 = vadd.f32 %v1141, %v1346
    %v1348 = vpop.f32.mrb[0].mxu0
    %v1349 = vpop.f32.mrb[0].mxu0
    %1350 = vdwg.mxu0
    %1351 = vmatprep.subr.bf16.mxu0 0
    %1352 = vmatpush1.bf16.msra.mxu0 %v1203
    %1353 = vmatprep.subr.bf16.mxu0 0
    %1354 = vmatpush1.bf16.msra.mxu0 %v1210
    %1355 = vmatprep.subr.bf16.mxu0 0
    %1356 = vmatpush1.bf16.msra.mxu0 0
    %1357 = vmatprep.subr.bf16.mxu0 0
    %1358 = vmatpush1.bf16.msra.mxu0 0
    %1359 = vmatprep.subr.bf16.mxu0 0
    %1360 = vmatpush1.bf16.msra.mxu0 0
    %1361 = vmatprep.subr.bf16.mxu0 0
    %1362 = vmatpush1.bf16.msra.mxu0 0
    %1363 = vmatprep.subr.bf16.mxu0 0
    %1364 = vmatpush1.bf16.msra.mxu0 0
    %1365 = vmatprep.subr.bf16.mxu0 0
    %1366 = vmatpush1.bf16.msra.mxu0 0
    %1367 = vmatprep.subr.bf16.mxu0 0
    %1368 = vmatpush1.bf16.msra.mxu0 0
    %1369 = vmatprep.subr.bf16.mxu0 0
    %1370 = vmatpush1.bf16.msra.mxu0 0
    %1371 = vmatprep.subr.bf16.mxu0 0
    %1372 = vmatpush1.bf16.msra.mxu0 0
    %1373 = vmatprep.subr.bf16.mxu0 0
    %1374 = vmatpush1.bf16.msra.mxu0 0
    %1375 = vmatprep.subr.bf16.mxu0 0
    %1376 = vmatpush1.bf16.msra.mxu0 0
    %1377 = vmatprep.subr.bf16.mxu0 0
    %1378 = vmatpush1.bf16.msra.mxu0 0
    %1379 = vmatprep.subr.bf16.mxu0 0
    %1380 = vmatpush1.bf16.msra.mxu0 0
    %1381 = vmatprep.subr.bf16.mxu0 0
    %1382 = vmatpush1.bf16.msra.mxu0 0
    %1383 = vmatprep.mubr.bf16.mxu0 0
    %1384 = vmatmul.mubr.bf16.gmra.mrb[0].mxu0 %v1226
    %v1385 = vpop.f32.mrb[0].mxu0
    %v1386 = vadd.f32 %v1145, %v1385
    %v1387 = vpop.f32.mrb[0].mxu0
    %v1388 = vpop.f32.mrb[0].mxu0
    %v1389 = vpop.f32.mrb[0].mxu0
    %1390 = vdwg.mxu0
    %v1391 = vxor.u32 %v1263, 2147483648
    %v1392 = vxor.u32 %v1265, 2147483648
    %v1393 = vxor.u32 %v1304, 2147483648
    %v1394 = vxor.u32 %v1306, 2147483648
    %v1395 = vxor.u32 %v1345, 2147483648
    %v1396 = vxor.u32 %v1347, 2147483648
    %v1397 = vxor.u32 %v1386, 2147483648
    %v1398 = vmul.f32 %v1391, 1.442695
    %v1399 = vpow.pop %v1398
    %v1400 = vmul.f32 %v1392, 1.442695
    %v1401 = vpow.pop %v1400
    %v1402 = vmul.f32 %v1393, 1.442695
    %v1403 = vpow.pop %v1402
    %v1404 = vmul.f32 %v1394, 1.442695
    %v1405 = vpow.pop %v1404
    %v1406 = vmul.f32 %v1395, 1.442695
    %v1407 = vpow.pop %v1406
    %v1408 = vmul.f32 %v1396, 1.442695
    %v1409 = vpow.pop %v1408
    %v1410 = vmul.f32 %v1397, 1.442695
    %v1411 = vpow.pop %v1410
    %v1412 = vadd.f32 %v1399, 1.0
    %v1413 = vadd.f32 %v1401, 1.0
    %v1414 = vadd.f32 %v1403, 1.0
    %v1415 = vadd.f32 %v1405, 1.0
    %v1416 = vadd.f32 %v1407, 1.0
    %v1417 = vadd.f32 %v1409, 1.0
    %v1418 = vadd.f32 %v1411, 1.0
    %v1419 = vrcp.pop %v1412
    %v1420 = vmul.f32 1.0, %v1419
    %v1421 = vrcp.pop %v1413
    %v1422 = vmul.f32 1.0, %v1421
    %v1423 = vrcp.pop %v1414
    %v1424 = vmul.f32 1.0, %v1423
    %v1425 = vrcp.pop %v1415
    %v1426 = vmul.f32 1.0, %v1425
    %v1427 = vrcp.pop %v1416
    %v1428 = vmul.f32 1.0, %v1427
    %v1429 = vrcp.pop %v1417
    %v1430 = vmul.f32 1.0, %v1429
    %v1431 = vrcp.pop %v1418
    %v1432 = vmul.f32 1.0, %v1431
    %v1433 = vlaneseq
    %v1434 = vand.u32 %v1433, 127
    %v1435 = vadd.s32 %v1434, 128
    %v1436 = vadd.s32 %v1434, 256
    %v1437 = vadd.s32 %v1434, 384
    %v1438 = vadd.s32 %v1434, 512
    %v1439 = vadd.s32 %v1434, 640
    %v1440 = vadd.s32 %v1434, 768
    %vm1441 = vcmp.lt.s32.totalorder %v1434, 784
    %vm1442 = vcmp.lt.s32.totalorder %v1435, 784
    %vm1443 = vcmp.lt.s32.totalorder %v1436, 784
    %vm1444 = vcmp.lt.s32.totalorder %v1437, 784
    %vm1445 = vcmp.lt.s32.totalorder %v1438, 784
    %vm1446 = vcmp.lt.s32.totalorder %v1439, 784
    %vm1447 = vcmp.lt.s32.totalorder %v1440, 784
    %v1448 = vsub.f32 %v58, %v1420
    %v1449 = vsub.f32 %v59, %v1422
    %v1450 = vsub.f32 %v60, %v1424
    %v1451 = vsub.f32 %v61, %v1426
    %v1452 = vsub.f32 %v62, %v1428
    %v1453 = vsub.f32 %v63, %v1430
    %v1454 = vsub.f32 %v64, %v1432
    %v1455 = vsel %vm1441, 1, 0
    %v1456 = vsel %vm1442, 1, 0
    %v1457 = vsel %vm1443, 1, 0
    %v1458 = vsel %vm1444, 1, 0
    %v1459 = vsel %vm1445, 1, 0
    %v1460 = vsel %vm1446, 1, 0
    %v1461 = vsel %vm1447, 1, 0
    %vm1462 = vcmp.eq.s32.totalorder %v1455, 1
    %vm1463 = vcmp.eq.s32.totalorder %v1456, 1
    %vm1464 = vcmp.eq.s32.totalorder %v1457, 1
    %vm1465 = vcmp.eq.s32.totalorder %v1458, 1
    %vm1466 = vcmp.eq.s32.totalorder %v1459, 1
    %vm1467 = vcmp.eq.s32.totalorder %v1460, 1
    %vm1468 = vcmp.eq.s32.totalorder %v1461, 1
    %v1469 = vsel %vm1462, %v1448, 0.0
    %v1470 = vsel %vm1463, %v1449, 0.0
    %v1471 = vsel %vm1464, %v1450, 0.0
    %v1472 = vsel %vm1465, %v1451, 0.0
    %v1473 = vsel %vm1466, %v1452, 0.0
    %v1474 = vsel %vm1467, %v1453, 0.0
    %v1475 = vsel %vm1468, %v1454, 0.0
    %v1476 = vmul.f32 %v1469, %v1469
    %v1477 = vmul.f32 %v1470, %v1470
    %v1478 = vmul.f32 %v1471, %v1471
    %v1479 = vmul.f32 %v1472, %v1472
    %v1480 = vmul.f32 %v1473, %v1473
    %v1481 = vmul.f32 %v1474, %v1474
    %v1482 = vmul.f32 %v1475, %v1475
    %v1483 = vadd.f32 %v1476, %v1477
    %v1484 = vadd.f32 %v1483, %v1478
    %v1485 = vadd.f32 %v1484, %v1479
    %v1486 = vadd.f32 %v1485, %v1480
    %v1487 = vadd.f32 %v1486, %v1481
    %v1488 = vadd.f32 %v1487, %v1482
    %1489 = vadd.xlane.f32.xlu0 %v1488
    %v1490 = vpop.xlane.xlu0 %1489
    %v1491 = vmul.f32 %v1490, 555.55554
    %v1492 = vadd.f32 %v1491, -2028.6936
    %v1493 = vsub.f32 0.0, %v1492
    %v1494 = vlog2.pop %v774
    %v1495 = vmul.f32 %v1494, 0.6931472
    %v1496 = vsub.f32 0.0, %v1495
    %v1497 = vmul.f32 %v774, %v774
    %v1498 = vmul.f32 %v751, %v751
    %1500 = vrot.lane.b32.xlu0 %v1498, 8
    %v1501 = vpop.permute.xlu0 %1500
    %v1503 = vadd.f32 %v1497, %v1501
    %v1504 = vmul.f32 %v1503, 0.5
    %v1505 = vadd.f32 %v1496, %v1504
    %v1506 = vsub.f32 %v1505, 0.5
    %1508 = vrot.lane.b32.xlu0 %v1506, 120
    %v1509 = vpop.permute.xlu0 %1508
    %v1511 = vsel %vm791, %v1509, 0.0
    %1512 = vadd.xlane.f32.xlu0 %v1511
    %v1513 = vpop.xlane.xlu0 %1512
    %v1514 = vsub.f32 %v1030, %v902
    %v1515 = vlog2.pop %v925
    %v1516 = vmul.f32 %v1515, 0.6931472
    %v1517 = vlog2.pop %v1013
    %v1518 = vmul.f32 %v1517, 0.6931472
    %v1519 = vsub.f32 %v1516, %v1518
    %v1520 = vmul.f32 %v1013, %v1013
    %v1521 = vmul.f32 %v1514, %v1514
    %1523 = vrot.lane.b32.xlu0 %v1521, 16
    %v1524 = vpop.permute.xlu0 %1523
    %v1526 = vadd.f32 %v1520, %v1524
    %v1527 = vmul.f32 %v1526, 0.5
    %v1528 = vmul.f32 %v1527, %v1009
    %v1529 = vadd.f32 %v1519, %v1528
    %v1530 = vsub.f32 %v1529, 0.5
    %1532 = vrot.lane.b32.xlu0 %v1530, 112
    %v1533 = vpop.permute.xlu0 %1532
    %v1535 = vsel %vm1054, %v1533, 0.0
    %1536 = vadd.xlane.f32.xlu0 %v1535
    %v1537 = vpop.xlane.xlu0 %1536
    %v1538 = vsub.f32 %v1493, %v1537
    %v1539 = vsub.f32 %v1538, %v1513
    %1541 = vrot.lane.b32.xlu0 %v781, 16
    %v1542 = vpop.permute.xlu0 %1541
    %1545 = vrot.lane.b32.xlu0 %v1030, 24
    %v1546 = vpop.permute.xlu0 %1545
    %1548 = vrot.lane.b32.xlu0 %v1013, 24
    %v1549 = vpop.permute.xlu0 %1548
    %1552 = vrot.lane.b32.xlu0 %v902, 56
    %v1553 = vpop.permute.xlu0 %1552
    %1556 = vrot.lane.b32.xlu0 %v925, 56
    %v1557 = vpop.permute.xlu0 %1556
    %v1559 = vsel %vm791, %v751, %v774
    %v1560 = vsel %vm1054, %v1559, %v1542
    %vm1561 = vcmask 195584
    %v1562 = vsel %vm1561, %v1560, %v1546
    %vm1563 = vcmask 326656
    %v1564 = vsel %vm1563, %v1562, %v1549
    %vm1565 = vcmask 457728
    %v1566 = vsel %vm1565, %v1564, %v1553
    %vm1567 = vcmask 588800
    %v1568 = vsel %vm1567, %v1566, %v1557
    %vm1569 = vcmask 719872
    %v1570 = vsel %vm1569, %v1568, %v1493
    %vm1571 = vcmask 728064
    %v1572 = vsel %vm1571, %v1570, %v1513
    %vm1573 = vcmask 736256
    %v1574 = vsel %vm1573, %v1572, %v1537
    %vm1575 = vcmask 744448
    %v1576 = vsel %vm1575, %v1574, %v1539
    %vm1577 = vcmask 752640
    %v1578 = vsel %vm1577, %v1576, 0.0
    %1579 = vst [vmem:[#allocation2] sm:$0xff] %v1578
    // Predicated region
    $region70: #{tpu_custom_call.1} parent=1 // pred_check
      _
    $region71: #{tpu_custom_call.1} parent=1 // pred_check_branch
      %1581 = sbr.rel (0) target = $region73
    $region72: #{tpu_custom_call.1} parent=1 // pred_region
      %s1583 = ssub.s32 128, 128
      %1584 = vsyncadd [#allocation3], %s1583
      %s1586 = sshll.u32 [#allocation2], 4
      %s1587 = int_to_ptr.vmem [resolvable:$true] %s1586
      %1589 = dma.vmem_to_hbm [thread:$0]  %s1587, 128, %s17, [#allocation3]
    $region73: #{tpu_custom_call.1} parent=1 // pred_fallthru
      _
    // Predicated region
    $region74: #{tpu_custom_call.1} parent=1 // pred_check
      _
    $region75: #{tpu_custom_call.1} parent=1 // pred_check_branch
      %1591 = sbr.rel (0) target = $region77
    $region76: #{tpu_custom_call.1} parent=1 // pred_region
      %1592 = dma.done [#allocation3], 128
    $region77: #{tpu_custom_call.1} parent=1 // pred_fallthru
      _
    %1593 = vsyncpa [#allocation3], 1

</llo_original>
